<compile_context>
chip_gen: v7x
topology: tpu7x:2x2x1
jax: 0.10.0
libtpu: 0.0.40
codegen_flags: <defaults>
</compile_context>

<pallas_src>
import jax
import jax.numpy as jnp
from jax import lax
from jax.experimental import pallas as pl
from jax.experimental.pallas import tpu as pltpu

KCONV = 100   # Conv1d kernel width
PAD = 50      # Conv1d padding
NCH = 10      # Conv1d output channels
_NEG_INIT = -1e30
_MAX_SINGLE_CHUNK = 4096   # sequences up to this length run as a single chunk (C == 1)


def _scores(h, f_ref, seb_ref, whe_ref, wfe_ref, wee_ref):
    """z = tanh(h @ W_he + f @ W_fe + (se + b_he)); returns e = W_ee . z^T as (1, Tt)."""
    z = jnp.dot(h, whe_ref[...], preferred_element_type=jnp.float32)           # (Tt, D2)
    z = z + jnp.dot(f_ref[...], wfe_ref[...], preferred_element_type=jnp.float32)
    z = jnp.tanh(z + seb_ref[...])                                              # (Tt, D2) f32
    # e = L_ee(z), produced T-on-lanes: (1, D2) x (Tt, D2)^T -> (1, Tt).
    return lax.dot_general(wee_ref[...], z, (((1,), (1,)), ((), ())),
                           preferred_element_type=jnp.float32)


def _newton_recip(x):
    inv = pl.reciprocal(x, approx=True)
    return inv * (2.0 - x * inv)       # one Newton step -> ~f32-exact 1/x


def _attn_kernel_single(h_ref, f_ref, mask_ref, seb_ref, whe_ref, wfe_ref, wee_ref,
                        g_ref, a_ref):
    """Whole sequence in one chunk (C == 1): plain masked softmax, no online rescale."""
    h = h_ref[...]                                                              # (T, E)
    e_row = _scores(h, f_ref, seb_ref, whe_ref, wfe_ref, wee_ref)              # (1, T)
    m = jnp.max(e_row, axis=-1, keepdims=True)
    en = jnp.exp(e_row - m) * mask_ref[...]                                     # (1, T)
    inv = _newton_recip(jnp.sum(en, axis=-1, keepdims=True))                    # (1, 1)
    a_ref[...] = en * inv                                                       # (1, T)
    g_ref[...] = jnp.dot(en.astype(h.dtype), h,
                         preferred_element_type=jnp.float32) * inv              # (1, E)


def _attn_kernel_chunked(h_ref, f_ref, mask_ref, seb_ref, whe_ref, wfe_ref, wee_ref,
                         g_ref, a_ref, m_scr, g_scr, e_scr):
    """Long sequences: flash-style online softmax over time chunks (t axis innermost)."""
    t = pl.program_id(1)
    n_t = pl.num_programs(1)

    @pl.when(t == 0)
    def _init():
        m_scr[...] = jnp.full(m_scr.shape, _NEG_INIT, jnp.float32)
        g_scr[...] = jnp.zeros(g_scr.shape, jnp.float32)

    h = h_ref[...]                                                              # (Tt, E)
    mask_t = mask_ref[pl.ds(t, 1), :]                                           # (1, Tt)
    e_row = _scores(h, f_ref, seb_ref, whe_ref, wfe_ref, wee_ref)              # (1, Tt)

    # Online accumulation of the unnormalized context vector.
    m_prev = m_scr[...]                                                         # (1, 1)
    m_new = jnp.maximum(m_prev, jnp.max(e_row, axis=-1, keepdims=True))
    p_w = jnp.exp(e_row - m_new) * mask_t                                       # (1, Tt)
    g_scr[...] = jnp.exp(m_prev - m_new) * g_scr[...] + jnp.dot(
        p_w.astype(h.dtype), h, preferred_element_type=jnp.float32)             # (1, E)
    m_scr[...] = m_new

    # Stash this chunk's raw scores; the whole (C, Tt) score buffer stays in VMEM.
    e_scr[pl.ds(t, 1), :] = e_row

    @pl.when(t == n_t - 1)
    def _finalize():
        en = jnp.exp(e_scr[...] - m_scr[...]) * mask_ref[...]                   # (C, Tt)
        denom = jnp.sum(jnp.sum(en, axis=-1, keepdims=True), axis=0,
                        keepdims=True)                                          # (1, 1)
        inv = _newton_recip(denom)
        a_ref[...] = en * inv                                                   # (C, Tt)
        g_ref[...] = g_scr[...] * inv                                           # (1, E)


def _pick_t_tile(T):
    if T <= _MAX_SINGLE_CHUNK:
        return T                     # C == 1: no reduction axis at all
    for cand in (4096, 2048, 1024, 512, 256, 128):
        if T % cand == 0:
            return cand
    return T                         # odd long lengths: fall back to one big chunk


def _attention_forward_impl(params, s, hbatch, alpha, e_mask,
                            compute_dtype=jnp.bfloat16, t_tile=None):
    B, T, E = hbatch.shape
    Dd = s.shape[-1]
    D2 = params['W_he'].shape[0]
    cd = compute_dtype

    if t_tile is None:
        t_tile = _pick_t_tile(T)
    assert T % t_tile == 0, "T must be divisible by the time tile"
    C = T // t_tile

    # Conv1d(1, NCH, KCONV, pad=PAD) over the previous attention weights, done once in
    # XLA; only its (B, T, NCH=10) output is streamed into the kernel (10x fewer bytes
    # than the width-100 im2col patches used before).
    conv = lax.conv_general_dilated(alpha, params['W_conv'], (1,), [(PAD, PAD)],
                                    dimension_numbers=('NCH', 'OIH', 'NCH'))     # (B, NCH, T+1)
    feat = jnp.transpose(conv, (0, 2, 1))[:, :T, :]                              # (B, T, NCH)

    # Hoisted t-invariant decoder-state projection (L_he bias folded in).
    se_bias = (s @ params['W_se'].T + params['b_he']).reshape(B, 1, D2)

    h_cd = hbatch.astype(cd)                                                     # (B, T, E)
    f_cd = feat.astype(cd)                                                       # (B, T, NCH)
    mask_f = e_mask.astype(jnp.float32)                                          # (B, T, 1)
    seb = se_bias.astype(jnp.float32)                                            # (B, 1, D2)
    whe = params['W_he'].T.astype(cd)                                            # (E, D2)
    wfe = params['W_fe'].T.astype(cd)                                            # (NCH, D2)
    wee = params['W_ee'].astype(jnp.float32)                                     # (1, D2)

    out_shape = (
        jax.ShapeDtypeStruct((B, 1, E), jnp.float32),
        jax.ShapeDtypeStruct((B, C, t_tile), jnp.float32),
    )

    if C == 1:
        # Single-chunk path: grid = (B,), batch axis "parallel" (megacore / v7x 2xTC).
        # TODO(synk): if B == 1 in production on v7x, split T over two chunks to give
        # the second TensorCore work.
        in_specs = [
            pl.BlockSpec((None, T, E), lambda b: (b, 0, 0)),
            pl.BlockSpec((None, T, NCH), lambda b: (b, 0, 0)),
            pl.BlockSpec((None, 1, T), lambda b: (b, 0, 0)),
            pl.BlockSpec((None, 1, D2), lambda b: (b, 0, 0)),
            pl.BlockSpec((E, D2), lambda b: (0, 0)),
            pl.BlockSpec((NCH, D2), lambda b: (0, 0)),
            pl.BlockSpec((1, D2), lambda b: (0, 0)),
        ]
        out_specs = (
            pl.BlockSpec((None, 1, E), lambda b: (b, 0, 0)),
            pl.BlockSpec((None, 1, T), lambda b: (b, 0, 0)),
        )
        g3, alpha_c = pl.pallas_call(
            _attn_kernel_single,
            out_shape=out_shape,
            grid_spec=pltpu.PrefetchScalarGridSpec(
                num_scalar_prefetch=0,
                grid=(B,),
                in_specs=in_specs,
                out_specs=out_specs,
            ),
            compiler_params=pltpu.CompilerParams(
                dimension_semantics=("parallel",),
                vmem_limit_bytes=32 * 1024 * 1024,
            ),
        )(h_cd, f_cd, mask_f.reshape(B, 1, T), seb, whe, wfe, wee)
    else:
        # Chunked path: grid = (B, C), time axis innermost ("arbitrary") so the online
        # softmax scratch is re-initialized at t == 0 and finalized at t == C-1 per batch.
        # TODO(synk): at very long T, bump pipeline_mode=pl.Buffered(3) on the h / feat
        # streams and cap e_scr via a second lightweight normalization pass.
        in_specs = [
            pl.BlockSpec((None, t_tile, E), lambda b, t: (b, t, 0)),
            pl.BlockSpec((None, t_tile, NCH), lambda b, t: (b, t, 0)),
            pl.BlockSpec((None, C, t_tile), lambda b, t: (b, 0, 0)),
            pl.BlockSpec((None, 1, D2), lambda b, t: (b, 0, 0)),
            pl.BlockSpec((E, D2), lambda b, t: (0, 0)),
            pl.BlockSpec((NCH, D2), lambda b, t: (0, 0)),
            pl.BlockSpec((1, D2), lambda b, t: (0, 0)),
        ]
        out_specs = (
            pl.BlockSpec((None, 1, E), lambda b, t: (b, 0, 0)),
            pl.BlockSpec((None, C, t_tile), lambda b, t: (b, 0, 0)),
        )
        scratch_shapes = [
            pltpu.VMEM((1, 1), jnp.float32),        # running max
            pltpu.VMEM((1, E), jnp.float32),        # unnormalized context accumulator
            pltpu.VMEM((C, t_tile), jnp.float32),   # per-chunk raw scores (whole T)
        ]
        g3, alpha_c = pl.pallas_call(
            _attn_kernel_chunked,
            out_shape=out_shape,
            grid_spec=pltpu.PrefetchScalarGridSpec(
                num_scalar_prefetch=0,
                grid=(B, C),
                in_specs=in_specs,
                out_specs=out_specs,
                scratch_shapes=scratch_shapes,
            ),
            compiler_params=pltpu.CompilerParams(
                dimension_semantics=("parallel", "arbitrary"),
                vmem_limit_bytes=32 * 1024 * 1024,
            ),
        )(h_cd, f_cd, mask_f.reshape(B, C, t_tile), seb, whe, wfe, wee)

    return g3.reshape(B, E), alpha_c.reshape(B, 1, T)


attention_forward = jax.jit(_attention_forward_impl,
                            static_argnames=("compute_dtype", "t_tile"))


def attention_ref(params, s, hbatch, alpha, e_mask):
    """Pure-JAX reference mirroring the PyTorch forward, for verification."""
    T = hbatch.shape[1]
    conv = lax.conv_general_dilated(alpha, params['W_conv'],
                                    window_strides=(1,), padding=[(PAD, PAD)],
                                    dimension_numbers=('NCH', 'OIH', 'NCH'))
    tmpconv = jnp.transpose(conv, (0, 2, 1))[:, :T, :]
    tmpconv = tmpconv @ params['W_fe'].T
    se = s @ params['W_se'].T
    he = hbatch @ params['W_he'].T + params['b_he']
    e = jnp.tanh(se[:, None, :] + he + tmpconv)
    e = e @ params['W_ee'].T
    e_nonlin = jnp.exp(e - jnp.max(e, axis=1, keepdims=True)) * e_mask
    alpha_new = e_nonlin / jnp.sum(e_nonlin, axis=1, keepdims=True)
    g = jnp.sum(alpha_new * hbatch, axis=1)
    return g, jnp.transpose(alpha_new, (0, 2, 1))


if __name__ == "__main__":
    # hp: num_hidden_nodes_decoder=32, num_hidden_nodes_encoder=32, encoder_type != 'Conformer'
    B, T = 2, 512
    Dd = 32                 # decoder hidden
    E = 32 * 2              # encoder hidden (BiRNN -> x2)
    D2 = 2 * Dd

    key = jax.random.PRNGKey(0)
    ks = jax.random.split(key, 10)
    params = {
        'W_se': 0.1 * jax.random.normal(ks[0], (D2, Dd), jnp.float32),
        'W_he': 0.1 * jax.random.normal(ks[1], (D2, E), jnp.float32),
        'b_he': 0.1 * jax.random.normal(ks[2], (D2,), jnp.float32),
        'W_ee': 0.1 * jax.random.normal(ks[3], (1, D2), jnp.float32),
        'W_fe': 0.1 * jax.random.normal(ks[4], (D2, NCH), jnp.float32),
        'W_conv': 0.1 * jax.random.normal(ks[5], (NCH, 1, KCONV), jnp.float32),
    }
    s = jax.random.normal(ks[6], (B, Dd), jnp.float32)
    hbatch = jax.random.normal(ks[7], (B, T, E), jnp.float32)
    alpha0 = jax.nn.softmax(jax.random.normal(ks[8], (B, 1, T), jnp.float32), axis=-1)
    # frame mask; second batch row has 100 padded frames masked out
    e_mask = jnp.ones((B, T, 1), jnp.float32).at[1, T - 100:, :].set(0.0)

    g_r, a_r = attention_ref(params, s, hbatch, alpha0, e_mask)

    # f32, single-chunk path (C == 1) -- tight check against the pure-JAX reference.
    g, a = attention_forward(params, s, hbatch, alpha0, e_mask,
                             compute_dtype=jnp.float32)
    jax.block_until_ready((g, a))
    assert g.shape == (B, E) and a.shape == (B, 1, T)
    assert jnp.allclose(g, g_r, atol=5e-4, rtol=5e-4), float(jnp.max(jnp.abs(g - g_r)))
    assert jnp.allclose(a, a_r, atol=5e-4, rtol=5e-4), float(jnp.max(jnp.abs(a - a_r)))

    # f32, chunked (online-softmax) path -- exercised by forcing a 128-row time tile.
    gc, ac = attention_forward(params, s, hbatch, alpha0, e_mask,
                               compute_dtype=jnp.float32, t_tile=128)
    jax.block_until_ready((gc, ac))
    assert jnp.allclose(gc, g_r, atol=5e-4, rtol=5e-4), float(jnp.max(jnp.abs(gc - g_r)))
    assert jnp.allclose(ac, a_r, atol=5e-4, rtol=5e-4), float(jnp.max(jnp.abs(ac - a_r)))

    # Default path (bf16 streaming, f32 accumulation) -- loose check reflecting bf16 rounding.
    g16, a16 = attention_forward(params, s, hbatch, alpha0, e_mask)
    jax.block_until_ready((g16, a16))
    assert jnp.allclose(g16, g_r, atol=2e-2, rtol=5e-2)
    assert jnp.allclose(a16, a_r, atol=2e-2, rtol=5e-2)

    print("KERNEL_OK")
</pallas_src>

<mosaic_0001>
module attributes {stable_mosaic.version = 11 : i64} {
  func.func @_attn_kernel_single(%arg0: i32, %arg1: memref<1x512x64xf32, #tpu.memory_space<vmem>>, %arg2: memref<1x512x10xf32, #tpu.memory_space<vmem>>, %arg3: memref<1x1x512xf32, #tpu.memory_space<vmem>>, %arg4: memref<1x1x64xf32, #tpu.memory_space<vmem>>, %arg5: memref<64x64xf32, #tpu.memory_space<vmem>>, %arg6: memref<10x64xf32, #tpu.memory_space<vmem>>, %arg7: memref<1x64xf32, #tpu.memory_space<vmem>>, %arg8: memref<1x1x64xf32, #tpu.memory_space<vmem>>, %arg9: memref<1x1x512xf32, #tpu.memory_space<vmem>>) attributes {dimension_semantics = [#tpu.dimension_semantics<parallel>], iteration_bounds = array<i64: 2>, scalar_prefetch = 0 : i64, scratch_operands = 0 : i64, tpu.core_type = #tpu.core_type<tc>, window_params = [{transform_indices = @transform_0, window_bounds = array<i64: 1, 512, 64>}, {transform_indices = @transform_1, window_bounds = array<i64: 1, 512, 10>}, {transform_indices = @transform_2, window_bounds = array<i64: 1, 1, 512>}, {transform_indices = @transform_3, window_bounds = array<i64: 1, 1, 64>}, {pipeline_mode = #tpu.pipeline_mode<synchronous>, transform_indices = @transform_4, window_bounds = array<i64: 64, 64>}, {pipeline_mode = #tpu.pipeline_mode<synchronous>, transform_indices = @transform_5, window_bounds = array<i64: 10, 64>}, {pipeline_mode = #tpu.pipeline_mode<synchronous>, transform_indices = @transform_6, window_bounds = array<i64: 1, 64>}, {transform_indices = @transform_7, window_bounds = array<i64: 1, 1, 64>}, {transform_indices = @transform_8, window_bounds = array<i64: 1, 1, 512>}]} {
    %c0 = arith.constant 0 : index
    %c0_0 = arith.constant 0 : index
    %c0_1 = arith.constant 0 : index
    %0 = vector.load %arg1[%c0, %c0_0, %c0_1] : memref<1x512x64xf32, #tpu.memory_space<vmem>>, vector<1x512x64xf32>
    %1 = vector.shape_cast %0 : vector<1x512x64xf32> to vector<512x64xf32>
    %c0_2 = arith.constant 0 : index
    %c0_3 = arith.constant 0 : index
    %2 = vector.load %arg5[%c0_2, %c0_3] : memref<64x64xf32, #tpu.memory_space<vmem>>, vector<64x64xf32>
    %cst = arith.constant dense<0.000000e+00> : vector<512x64xf32>
    %3 = tpu.matmul %1, %2, %cst {dimension_numbers = #tpu.dot_dimension_numbers<[1], [0], [0], [1], [0, 0, 1, 1], [], []>} : vector<512x64xf32>, vector<64x64xf32>, vector<512x64xf32> -> vector<512x64xf32>
    %c0_4 = arith.constant 0 : index
    %c0_5 = arith.constant 0 : index
    %c0_6 = arith.constant 0 : index
    %4 = vector.load %arg2[%c0_4, %c0_5, %c0_6] : memref<1x512x10xf32, #tpu.memory_space<vmem>>, vector<1x512x10xf32>
    %5 = vector.shape_cast %4 : vector<1x512x10xf32> to vector<512x10xf32>
    %c0_7 = arith.constant 0 : index
    %c0_8 = arith.constant 0 : index
    %6 = vector.load %arg6[%c0_7, %c0_8] : memref<10x64xf32, #tpu.memory_space<vmem>>, vector<10x64xf32>
    %cst_9 = arith.constant dense<0.000000e+00> : vector<512x64xf32>
    %7 = tpu.matmul %5, %6, %cst_9 {dimension_numbers = #tpu.dot_dimension_numbers<[1], [0], [0], [1], [0, 0, 1, 1], [], []>} : vector<512x10xf32>, vector<10x64xf32>, vector<512x64xf32> -> vector<512x64xf32>
    %8 = arith.addf %3, %7 : vector<512x64xf32>
    %c0_10 = arith.constant 0 : index
    %c0_11 = arith.constant 0 : index
    %c0_12 = arith.constant 0 : index
    %9 = vector.load %arg4[%c0_10, %c0_11, %c0_12] : memref<1x1x64xf32, #tpu.memory_space<vmem>>, vector<1x1x64xf32>
    %10 = vector.shape_cast %9 : vector<1x1x64xf32> to vector<1x64xf32>
    %11 = vector.broadcast %10 : vector<1x64xf32> to vector<512x64xf32>
    %12 = arith.addf %8, %11 : vector<512x64xf32>
    %13 = math.tanh %12 : vector<512x64xf32>
    %c0_13 = arith.constant 0 : index
    %c0_14 = arith.constant 0 : index
    %14 = vector.load %arg7[%c0_13, %c0_14] : memref<1x64xf32, #tpu.memory_space<vmem>>, vector<1x64xf32>
    %cst_15 = arith.constant dense<0.000000e+00> : vector<1x512xf32>
    %15 = tpu.matmul %14, %13, %cst_15 {dimension_numbers = #tpu.dot_dimension_numbers<[1], [1], [0], [0], [0, 0, 1, 0], [], []>} : vector<1x64xf32>, vector<512x64xf32>, vector<1x512xf32> -> vector<1x512xf32>
    %cst_16 = arith.constant dense<0xFF800000> : vector<1xf32>
    %16 = vector.multi_reduction <maximumf>, %15, %cst_16 [1] : vector<1x512xf32> to vector<1xf32>
    %17 = vector.shape_cast %16 : vector<1xf32> to vector<1x1xf32>
    %18 = vector.broadcast %17 : vector<1x1xf32> to vector<1x512xf32>
    %19 = arith.subf %15, %18 : vector<1x512xf32>
    %20 = math.exp %19 : vector<1x512xf32>
    %c0_17 = arith.constant 0 : index
    %c0_18 = arith.constant 0 : index
    %c0_19 = arith.constant 0 : index
    %21 = vector.load %arg3[%c0_17, %c0_18, %c0_19] : memref<1x1x512xf32, #tpu.memory_space<vmem>>, vector<1x1x512xf32>
    %22 = vector.shape_cast %21 : vector<1x1x512xf32> to vector<1x512xf32>
    %23 = arith.mulf %20, %22 : vector<1x512xf32>
    %cst_20 = arith.constant dense<0.000000e+00> : vector<1xf32>
    %24 = vector.multi_reduction <add>, %23, %cst_20 [1] : vector<1x512xf32> to vector<1xf32>
    %25 = vector.shape_cast %24 : vector<1xf32> to vector<1x1xf32>
    %26 = tpu.reciprocal %25 {approx = true} : vector<1x1xf32> -> vector<1x1xf32>
    %27 = arith.mulf %25, %26 : vector<1x1xf32>
    %cst_21 = arith.constant 2.000000e+00 : f32
    %28 = vector.broadcast %cst_21 : f32 to vector<1x1xf32>
    %29 = arith.subf %28, %27 : vector<1x1xf32>
    %30 = arith.mulf %26, %29 : vector<1x1xf32>
    %31 = vector.broadcast %30 : vector<1x1xf32> to vector<1x512xf32>
    %32 = arith.mulf %23, %31 : vector<1x512xf32>
    %c0_22 = arith.constant 0 : index
    %c0_23 = arith.constant 0 : index
    %c0_24 = arith.constant 0 : index
    %33 = vector.load %arg9[%c0_22, %c0_23, %c0_24] : memref<1x1x512xf32, #tpu.memory_space<vmem>>, vector<1x1x512xf32>
    %34 = vector.shape_cast %33 : vector<1x1x512xf32> to vector<1x512xf32>
    %35 = vector.shape_cast %32 : vector<1x512xf32> to vector<1x1x512xf32>
    tpu.vector_store %arg9[%c0_22, %c0_23, %c0_24], %35 {strides = array<i32>} : memref<1x1x512xf32, #tpu.memory_space<vmem>>, vector<1x1x512xf32>,
    %cst_25 = arith.constant dense<0.000000e+00> : vector<1x64xf32>
    %36 = tpu.matmul %23, %1, %cst_25 {dimension_numbers = #tpu.dot_dimension_numbers<[1], [0], [0], [1], [0, 0, 1, 1], [], []>} : vector<1x512xf32>, vector<512x64xf32>, vector<1x64xf32> -> vector<1x64xf32>
    %37 = vector.broadcast %30 : vector<1x1xf32> to vector<1x64xf32>
    %38 = arith.mulf %36, %37 : vector<1x64xf32>
    %c0_26 = arith.constant 0 : index
    %c0_27 = arith.constant 0 : index
    %c0_28 = arith.constant 0 : index
    %39 = vector.load %arg8[%c0_26, %c0_27, %c0_28] : memref<1x1x64xf32, #tpu.memory_space<vmem>>, vector<1x1x64xf32>
    %40 = vector.shape_cast %39 : vector<1x1x64xf32> to vector<1x64xf32>
    %41 = vector.shape_cast %38 : vector<1x64xf32> to vector<1x1x64xf32>
    tpu.vector_store %arg8[%c0_26, %c0_27, %c0_28], %41 {strides = array<i32>} : memref<1x1x64xf32, #tpu.memory_space<vmem>>, vector<1x1x64xf32>,
    return
  }
  func.func @transform_0(%arg0: i32) -> (i32, i32, i32) {
    %c0_i32 = arith.constant 0 : i32
    %c0_i32_0 = arith.constant 0 : i32
    %c0_i32_1 = arith.constant 0 : i32
    return %arg0, %c0_i32, %c0_i32_0 : i32, i32, i32
  }
  func.func @transform_1(%arg0: i32) -> (i32, i32, i32) {
    %c0_i32 = arith.constant 0 : i32
    %c0_i32_0 = arith.constant 0 : i32
    %c0_i32_1 = arith.constant 0 : i32
    return %arg0, %c0_i32, %c0_i32_0 : i32, i32, i32
  }
  func.func @transform_2(%arg0: i32) -> (i32, i32, i32) {
    %c0_i32 = arith.constant 0 : i32
    %c0_i32_0 = arith.constant 0 : i32
    %c0_i32_1 = arith.constant 0 : i32
    return %arg0, %c0_i32, %c0_i32_0 : i32, i32, i32
  }
  func.func @transform_3(%arg0: i32) -> (i32, i32, i32) {
    %c0_i32 = arith.constant 0 : i32
    %c0_i32_0 = arith.constant 0 : i32
    %c0_i32_1 = arith.constant 0 : i32
    return %arg0, %c0_i32, %c0_i32_0 : i32, i32, i32
  }
  func.func @transform_4(%arg0: i32) -> (i32, i32) {
    %c0_i32 = arith.constant 0 : i32
    %c0_i32_0 = arith.constant 0 : i32
    %c0_i32_1 = arith.constant 0 : i32
    return %c0_i32, %c0_i32_0 : i32, i32
  }
  func.func @transform_5(%arg0: i32) -> (i32, i32) {
    %c0_i32 = arith.constant 0 : i32
    %c0_i32_0 = arith.constant 0 : i32
    %c0_i32_1 = arith.constant 0 : i32
    return %c0_i32, %c0_i32_0 : i32, i32
  }
  func.func @transform_6(%arg0: i32) -> (i32, i32) {
    %c0_i32 = arith.constant 0 : i32
    %c0_i32_0 = arith.constant 0 : i32
    %c0_i32_1 = arith.constant 0 : i32
    return %c0_i32, %c0_i32_0 : i32, i32
  }
  func.func @transform_7(%arg0: i32) -> (i32, i32, i32) {
    %c0_i32 = arith.constant 0 : i32
    %c0_i32_0 = arith.constant 0 : i32
    %c0_i32_1 = arith.constant 0 : i32
    return %arg0, %c0_i32, %c0_i32_0 : i32, i32, i32
  }
  func.func @transform_8(%arg0: i32) -> (i32, i32, i32) {
    %c0_i32 = arith.constant 0 : i32
    %c0_i32_0 = arith.constant 0 : i32
    %c0_i32_1 = arith.constant 0 : i32
    return %arg0, %c0_i32, %c0_i32_0 : i32, i32, i32
  }
}

</mosaic_0001>

<llo_original>
// kernel: _attention_forward_impl.1
$region0: #{_attention_forward_impl.1}
  #allocation0 [shape = 'u32[]', space=smem, size = 0x4, offset = 0x4, fixed_abs, tag = 'smem constant byte address 0x4 - core index']
  #allocation1 [shape = 'u32[144,128]{1,0:T(1,128)}', space=vmem, size = 0x12000, scoped, tag = 'internal scratch']
  %s0 = inlined_call_operand.vmem [shape: f32[2,512,64], index: 0, kind: input, shape index: {}]
  %s1 = inlined_call_operand.vmem [shape: f32[2,512,10], index: 1, kind: input, shape index: {}]
  %s2 = inlined_call_operand.vmem [shape: f32[2,1,512], index: 2, kind: input, shape index: {}]
  %s3 = inlined_call_operand.vmem [shape: f32[2,1,64], index: 3, kind: input, shape index: {}]
  %s4 = inlined_call_operand.vmem [shape: f32[64,64], index: 4, kind: input, shape index: {}]
  %s5 = inlined_call_operand.vmem [shape: f32[10,64], index: 5, kind: input, shape index: {}]
  %s6 = inlined_call_operand.vmem [shape: f32[1,64], index: 6, kind: input, shape index: {}]
  %s7 = inlined_call_operand.hbm [shape: f32[2,1,64], index: 7, kind: output, shape index: {0}]
  %s8 = inlined_call_operand.hbm [shape: f32[2,1,512], index: 8, kind: output, shape index: {1}]
  %9 = xla_tuple %s7, %s8
  %s10 = sld [smem:[#allocation0]]
  $region69: #{_attention_forward_impl.1} parent=0
    _
  %s12 = ssub.s32 1, %s10
  %s13 = scalar_select 0, %s12, %s10
  $region1: #{_attention_forward_impl.1} parent=0
    #allocation2 [shape = 'u8[1024]{0}', space=vmem, size = 0x400, scoped, tag = 'output window, operand 0']
    #allocation3 [shape = 's32[2]{0}', space=sflag, size = 0x8, scoped, tag = 'scoped memory for _attention_forward_impl.1']
    #allocation4 [shape = 'u8[4096]{0}', space=vmem, size = 0x1000, scoped, tag = 'output window, operand 1']
    #allocation5 [shape = 's32[2]{0}', space=sflag, size = 0x8, scoped, tag = 'scoped memory for _attention_forward_impl.1']
    %14 = vsyncpa [#allocation3], 0
    %s15 = scalar_lea.sflag [#allocation3], 1
    %16 = vsyncpa %s15, 0
    %17 = vsyncpa [#allocation5], 0
    %s18 = scalar_lea.sflag [#allocation5], 1
    %19 = vsyncpa %s18, 0
    loop: start=0, step=1, limit=4
    $region2: #{_attention_forward_impl.1} parent=1 // loop_pre_header
      _
    $region3: #{_attention_forward_impl.1} parent=1 // loop_header
      %s21 = sphi 0, %s25
      %p22 = scmp.ge.s32.totalorder %s21, 4
      %s31 = sphi 0, %s33
      %s34 = sphi 0, %s31
      %s35 = sphi 0, %s34
      %s51 = sphi 0, %s35
      %s57 = sphi 0, %s59
      %s60 = sphi 0, %s57
      %s61 = sphi 0, %s60
      %s77 = sphi 0, %s61
      %s83 = sphi 0, %s85
      %s86 = sphi 0, %s83
      %s87 = sphi 0, %s86
      %s103 = sphi 0, %s87
      %s109 = sphi 0, %s111
      %s112 = sphi 0, %s109
      %s113 = sphi 0, %s112
      %s129 = sphi 0, %s113
      %s133 = sphi 0, %s133
      %s135 = sphi 0, %s133
      %s136 = sphi 0, %s135
      %s150 = sphi 0, %s136
      %s154 = sphi 0, %s154
      %s156 = sphi 0, %s154
      %s157 = sphi 0, %s156
      %s171 = sphi 0, %s157
      %s175 = sphi 0, %s175
      %s177 = sphi 0, %s175
      %s178 = sphi 0, %s177
      %s192 = sphi 0, %s178
      %s198 = sphi 0, %s200
      %s201 = sphi 0, %s198
      %s202 = sphi 0, %s201
      %s218 = sphi 0, %s202
      %s224 = sphi 0, %s226
      %s227 = sphi 0, %s224
      %s228 = sphi 0, %s227
      %s244 = sphi 0, %s228
    $region4: #{_attention_forward_impl.1} parent=1 // loop_header_branch
      %24 = sbr.rel (%p22) target = $region8
    $region5: #{_attention_forward_impl.1} parent=1 // loop_body
      %s26 = ssub.s32 %s21, 1
      %s27 = ssub.s32 %s21, 2
      %s28 = sadd.s32 %s21, 1
      %s29 = ssub.s32 %s21, %s28
      %p30 = scmp.eq.s32.totalorder %s29, 0
      %s32 = sadd.s32 %s31, 1
      %s33 = scalar_select %p30, %s31, %s32
      %p36 = pneg %p30
      %p37 = scmp.eq.s32.totalorder %s21, 1
      %p38 = por %p36, %p37
      %p39 = scmp.ne.s32.totalorder %s31, %s34
      %p40 = scmp.eq.s32.totalorder %s21, 0
      %p41 = por %p39, %p40
      %p42 = scmp.ne.s32.totalorder %s31, %s34
      %p43 = scmp.eq.s32.totalorder %s26, 1
      %p44 = por %p42, %p43
      %p45 = scmp.ne.s32.totalorder %s34, %s35
      %p46 = scmp.eq.s32.totalorder %s26, 0
      %p47 = por %p45, %p46
      %p48 = scmp.ne.s32.totalorder %s34, %s35
      %p49 = scmp.eq.s32.totalorder %s27, 1
      %p50 = por %p48, %p49
      %p52 = scmp.ne.s32.totalorder %s35, %s51
      %p53 = scmp.eq.s32.totalorder %s27, 0
      %p54 = por %p52, %p53
      %s55 = ssub.s32 %s21, %s28
      %p56 = scmp.eq.s32.totalorder %s55, 0
      %s58 = sadd.s32 %s57, 1
      %s59 = scalar_select %p56, %s57, %s58
      %p62 = pneg %p56
      %p63 = scmp.eq.s32.totalorder %s21, 1
      %p64 = por %p62, %p63
      %p65 = scmp.ne.s32.totalorder %s57, %s60
      %p66 = scmp.eq.s32.totalorder %s21, 0
      %p67 = por %p65, %p66
      %p68 = scmp.ne.s32.totalorder %s57, %s60
      %p69 = scmp.eq.s32.totalorder %s26, 1
      %p70 = por %p68, %p69
      %p71 = scmp.ne.s32.totalorder %s60, %s61
      %p72 = scmp.eq.s32.totalorder %s26, 0
      %p73 = por %p71, %p72
      %p74 = scmp.ne.s32.totalorder %s60, %s61
      %p75 = scmp.eq.s32.totalorder %s27, 1
      %p76 = por %p74, %p75
      %p78 = scmp.ne.s32.totalorder %s61, %s77
      %p79 = scmp.eq.s32.totalorder %s27, 0
      %p80 = por %p78, %p79
      %s81 = ssub.s32 %s21, %s28
      %p82 = scmp.eq.s32.totalorder %s81, 0
      %s84 = sadd.s32 %s83, 1
      %s85 = scalar_select %p82, %s83, %s84
      %p88 = pneg %p82
      %p89 = scmp.eq.s32.totalorder %s21, 1
      %p90 = por %p88, %p89
      %p91 = scmp.ne.s32.totalorder %s83, %s86
      %p92 = scmp.eq.s32.totalorder %s21, 0
      %p93 = por %p91, %p92
      %p94 = scmp.ne.s32.totalorder %s83, %s86
      %p95 = scmp.eq.s32.totalorder %s26, 1
      %p96 = por %p94, %p95
      %p97 = scmp.ne.s32.totalorder %s86, %s87
      %p98 = scmp.eq.s32.totalorder %s26, 0
      %p99 = por %p97, %p98
      %p100 = scmp.ne.s32.totalorder %s86, %s87
      %p101 = scmp.eq.s32.totalorder %s27, 1
      %p102 = por %p100, %p101
      %p104 = scmp.ne.s32.totalorder %s87, %s103
      %p105 = scmp.eq.s32.totalorder %s27, 0
      %p106 = por %p104, %p105
      %s107 = ssub.s32 %s21, %s28
      %p108 = scmp.eq.s32.totalorder %s107, 0
      %s110 = sadd.s32 %s109, 1
      %s111 = scalar_select %p108, %s109, %s110
      %p114 = pneg %p108
      %p115 = scmp.eq.s32.totalorder %s21, 1
      %p116 = por %p114, %p115
      %p117 = scmp.ne.s32.totalorder %s109, %s112
      %p118 = scmp.eq.s32.totalorder %s21, 0
      %p119 = por %p117, %p118
      %p120 = scmp.ne.s32.totalorder %s109, %s112
      %p121 = scmp.eq.s32.totalorder %s26, 1
      %p122 = por %p120, %p121
      %p123 = scmp.ne.s32.totalorder %s112, %s113
      %p124 = scmp.eq.s32.totalorder %s26, 0
      %p125 = por %p123, %p124
      %p126 = scmp.ne.s32.totalorder %s112, %s113
      %p127 = scmp.eq.s32.totalorder %s27, 1
      %p128 = por %p126, %p127
      %p130 = scmp.ne.s32.totalorder %s113, %s129
      %p131 = scmp.eq.s32.totalorder %s27, 0
      %p132 = por %p130, %p131
      %s134 = sadd.s32 %s133, 1
      %p137 = scmp.eq.s32.totalorder %s21, 1
      %p138 = scmp.ne.s32.totalorder %s133, %s135
      %p139 = scmp.eq.s32.totalorder %s21, 0
      %p140 = por %p138, %p139
      %p141 = scmp.ne.s32.totalorder %s133, %s135
      %p142 = scmp.eq.s32.totalorder %s26, 1
      %p143 = por %p141, %p142
      %p144 = scmp.ne.s32.totalorder %s135, %s136
      %p145 = scmp.eq.s32.totalorder %s26, 0
      %p146 = por %p144, %p145
      %p147 = scmp.ne.s32.totalorder %s135, %s136
      %p148 = scmp.eq.s32.totalorder %s27, 1
      %p149 = por %p147, %p148
      %p151 = scmp.ne.s32.totalorder %s136, %s150
      %p152 = scmp.eq.s32.totalorder %s27, 0
      %p153 = por %p151, %p152
      %s155 = sadd.s32 %s154, 1
      %p158 = scmp.eq.s32.totalorder %s21, 1
      %p159 = scmp.ne.s32.totalorder %s154, %s156
      %p160 = scmp.eq.s32.totalorder %s21, 0
      %p161 = por %p159, %p160
      %p162 = scmp.ne.s32.totalorder %s154, %s156
      %p163 = scmp.eq.s32.totalorder %s26, 1
      %p164 = por %p162, %p163
      %p165 = scmp.ne.s32.totalorder %s156, %s157
      %p166 = scmp.eq.s32.totalorder %s26, 0
      %p167 = por %p165, %p166
      %p168 = scmp.ne.s32.totalorder %s156, %s157
      %p169 = scmp.eq.s32.totalorder %s27, 1
      %p170 = por %p168, %p169
      %p172 = scmp.ne.s32.totalorder %s157, %s171
      %p173 = scmp.eq.s32.totalorder %s27, 0
      %p174 = por %p172, %p173
      %s176 = sadd.s32 %s175, 1
      %p179 = scmp.eq.s32.totalorder %s21, 1
      %p180 = scmp.ne.s32.totalorder %s175, %s177
      %p181 = scmp.eq.s32.totalorder %s21, 0
      %p182 = por %p180, %p181
      %p183 = scmp.ne.s32.totalorder %s175, %s177
      %p184 = scmp.eq.s32.totalorder %s26, 1
      %p185 = por %p183, %p184
      %p186 = scmp.ne.s32.totalorder %s177, %s178
      %p187 = scmp.eq.s32.totalorder %s26, 0
      %p188 = por %p186, %p187
      %p189 = scmp.ne.s32.totalorder %s177, %s178
      %p190 = scmp.eq.s32.totalorder %s27, 1
      %p191 = por %p189, %p190
      %p193 = scmp.ne.s32.totalorder %s178, %s192
      %p194 = scmp.eq.s32.totalorder %s27, 0
      %p195 = por %p193, %p194
      %s196 = ssub.s32 %s21, %s28
      %p197 = scmp.eq.s32.totalorder %s196, 0
      %s199 = sadd.s32 %s198, 1
      %s200 = scalar_select %p197, %s198, %s199
      %p203 = pneg %p197
      %p204 = scmp.eq.s32.totalorder %s21, 1
      %p205 = por %p203, %p204
      %p206 = scmp.ne.s32.totalorder %s198, %s201
      %p207 = scmp.eq.s32.totalorder %s21, 0
      %p208 = por %p206, %p207
      %p209 = scmp.ne.s32.totalorder %s198, %s201
      %p210 = scmp.eq.s32.totalorder %s26, 1
      %p211 = por %p209, %p210
      %p212 = scmp.ne.s32.totalorder %s201, %s202
      %p213 = scmp.eq.s32.totalorder %s26, 0
      %p214 = por %p212, %p213
      %p215 = scmp.ne.s32.totalorder %s201, %s202
      %p216 = scmp.eq.s32.totalorder %s27, 1
      %p217 = por %p215, %p216
      %p219 = scmp.ne.s32.totalorder %s202, %s218
      %p220 = scmp.eq.s32.totalorder %s27, 0
      %p221 = por %p219, %p220
      %s222 = ssub.s32 %s21, %s28
      %p223 = scmp.eq.s32.totalorder %s222, 0
      %s225 = sadd.s32 %s224, 1
      %s226 = scalar_select %p223, %s224, %s225
      %p229 = pneg %p223
      %p230 = scmp.eq.s32.totalorder %s21, 1
      %p231 = por %p229, %p230
      %p232 = scmp.ne.s32.totalorder %s224, %s227
      %p233 = scmp.eq.s32.totalorder %s21, 0
      %p234 = por %p232, %p233
      %p235 = scmp.ne.s32.totalorder %s224, %s227
      %p236 = scmp.eq.s32.totalorder %s26, 1
      %p237 = por %p235, %p236
      %p238 = scmp.ne.s32.totalorder %s227, %s228
      %p239 = scmp.eq.s32.totalorder %s26, 0
      %p240 = por %p238, %p239
      %p241 = scmp.ne.s32.totalorder %s227, %s228
      %p242 = scmp.eq.s32.totalorder %s27, 1
      %p243 = por %p241, %p242
      %p245 = scmp.ne.s32.totalorder %s228, %s244
      %p246 = scmp.eq.s32.totalorder %s27, 0
      %p247 = por %p245, %p246
      %p248 = scmp.le.s32.totalorder 1, %s21
      %p249 = scmp.lt.s32.totalorder %s21, 3
      %p250 = pnand %p248, %p249
      %p251 = pneg %p250
      // Predicated region
      $region9: #{_attention_forward_impl.1} parent=5 // pred_check
        _
      $region10: #{_attention_forward_impl.1} parent=5 // pred_check_branch
        %253 = sbr.rel (%p250) target = $region12
      $region11: #{_attention_forward_impl.1} parent=5 // pred_region
        %s254 = ssub.s32 %s21, 1
        // Predicated region
        $region13: #{_attention_forward_impl.1} parent=11 // pred_check
          %p255 = pneg %p146
        $region14: #{_attention_forward_impl.1} parent=11 // pred_check_branch
          %257 = sbr.rel (%p255) target = $region16
        $region15: #{_attention_forward_impl.1} parent=11 // pred_region
          _
        $region16: #{_attention_forward_impl.1} parent=11 // pred_fallthru
          _
        // Predicated region
        $region17: #{_attention_forward_impl.1} parent=11 // pred_check
          %p258 = pneg %p167
        $region18: #{_attention_forward_impl.1} parent=11 // pred_check_branch
          %260 = sbr.rel (%p258) target = $region20
        $region19: #{_attention_forward_impl.1} parent=11 // pred_region
          _
        $region20: #{_attention_forward_impl.1} parent=11 // pred_fallthru
          _
        // Predicated region
        $region21: #{_attention_forward_impl.1} parent=11 // pred_check
          %p261 = pneg %p188
        $region22: #{_attention_forward_impl.1} parent=11 // pred_check_branch
          %263 = sbr.rel (%p261) target = $region24
        $region23: #{_attention_forward_impl.1} parent=11 // pred_region
          _
        $region24: #{_attention_forward_impl.1} parent=11 // pred_fallthru
          _
      $region12: #{_attention_forward_impl.1} parent=5 // pred_fallthru
        _
      %p264 = scmp.lt.s32.totalorder %s21, 2
      // Predicated region
      $region25: #{_attention_forward_impl.1} parent=5 // pred_check
        %p265 = pneg %p264
      $region26: #{_attention_forward_impl.1} parent=5 // pred_check_branch
        %267 = sbr.rel (%p265) target = $region28
      $region27: #{_attention_forward_impl.1} parent=5 // pred_region
        // Predicated region
        $region29: #{_attention_forward_impl.1} parent=27 // pred_check
          %p268 = pneg %p41
        $region30: #{_attention_forward_impl.1} parent=27 // pred_check_branch
          %270 = sbr.rel (%p268) target = $region32
        $region31: #{_attention_forward_impl.1} parent=27 // pred_region
          %p271 = scmp.lt.s32.totalorder %s21, 1
          %s272 = scalar_select %p271, %s21, 1
          %s273 = smul.addr %s272, 64
          %s274 = smul.addr %s273, 8
          %s275 = scalar_lea.vmem %s0, %s274
        $region32: #{_attention_forward_impl.1} parent=27 // pred_fallthru
          _
        // Predicated region
        $region33: #{_attention_forward_impl.1} parent=27 // pred_check
          %p276 = pneg %p67
        $region34: #{_attention_forward_impl.1} parent=27 // pred_check_branch
          %278 = sbr.rel (%p276) target = $region36
        $region35: #{_attention_forward_impl.1} parent=27 // pred_region
          %p279 = scmp.lt.s32.totalorder %s21, 1
          %s280 = scalar_select %p279, %s21, 1
          %s281 = smul.addr %s280, 64
          %s282 = smul.addr %s281, 8
          %s283 = scalar_lea.vmem %s1, %s282
        $region36: #{_attention_forward_impl.1} parent=27 // pred_fallthru
          _
        // Predicated region
        $region37: #{_attention_forward_impl.1} parent=27 // pred_check
          %p284 = pneg %p93
        $region38: #{_attention_forward_impl.1} parent=27 // pred_check_branch
          %286 = sbr.rel (%p284) target = $region40
        $region39: #{_attention_forward_impl.1} parent=27 // pred_region
          %p287 = scmp.lt.s32.totalorder %s21, 1
          %s288 = scalar_select %p287, %s21, 1
          %s289 = smul.addr %s288, 4
          %s290 = scalar_lea.vmem %s2, %s289
        $region40: #{_attention_forward_impl.1} parent=27 // pred_fallthru
          _
        // Predicated region
        $region41: #{_attention_forward_impl.1} parent=27 // pred_check
          %p291 = pneg %p119
        $region42: #{_attention_forward_impl.1} parent=27 // pred_check_branch
          %293 = sbr.rel (%p291) target = $region44
        $region43: #{_attention_forward_impl.1} parent=27 // pred_region
          %p294 = scmp.lt.s32.totalorder %s21, 1
          %s295 = scalar_select %p294, %s21, 1
          %s296 = scalar_lea.vmem %s3, %s295
        $region44: #{_attention_forward_impl.1} parent=27 // pred_fallthru
          _
      $region28: #{_attention_forward_impl.1} parent=5 // pred_fallthru
        _
      %p297 = scmp.le.s32.totalorder 1, %s21
      %p298 = scmp.lt.s32.totalorder %s21, 3
      %p299 = pnand %p297, %p298
      %p300 = pneg %p299
      // Predicated region
      $region45: #{_attention_forward_impl.1} parent=5 // pred_check
        _
      $region46: #{_attention_forward_impl.1} parent=5 // pred_check_branch
        %302 = sbr.rel (%p299) target = $region48
      $region47: #{_attention_forward_impl.1} parent=5 // pred_region
        %s303 = ssub.s32 %s21, 1
        %p304 = scmp.lt.s32.totalorder %s26, 1
        %s305 = scalar_select %p304, %s26, 1
        %s306 = smul.addr %s305, 64
        %s307 = smul.addr %s306, 8
        %s308 = scalar_lea.vmem %s0, %s307
        %p309 = pneg %p47
        %p310 = pneg %p44
        %p311 = scmp.lt.s32.totalorder %s26, 1
        %s312 = scalar_select %p311, %s26, 1
        %s313 = smul.addr %s312, 64
        %s314 = smul.addr %s313, 8
        %s315 = scalar_lea.vmem %s1, %s314
        %p316 = pneg %p73
        %p317 = pneg %p70
        %p318 = scmp.lt.s32.totalorder %s26, 1
        %s319 = scalar_select %p318, %s26, 1
        %s320 = smul.addr %s319, 4
        %s321 = scalar_lea.vmem %s2, %s320
        %p322 = pneg %p99
        %p323 = pneg %p96
        %p324 = scmp.lt.s32.totalorder %s26, 1
        %s325 = scalar_select %p324, %s26, 1
        %s326 = scalar_lea.vmem %s3, %s325
        %p327 = pneg %p125
        %p328 = pneg %p122
        %p329 = pneg %p146
        %p330 = pneg %p143
        %p331 = pneg %p167
        %p332 = pneg %p164
        %p333 = pneg %p188
        %p334 = pneg %p185
        %p335 = pneg %p214
        %p336 = pneg %p211
        %s337 = sand.u32 %s201, 1
        %s338 = scalar_lea.sflag [#allocation3], %s337
        %s339 = sand.u32 %s201, 1
        %s340 = scalar_lea.vmem [#allocation2], %s339
        %p341 = pneg %p240
        %p342 = pneg %p237
        %s343 = sand.u32 %s227, 1
        %s344 = scalar_lea.sflag [#allocation5], %s343
        %s345 = sand.u32 %s227, 1
        %s346 = smul.addr %s345, 4
        %s347 = scalar_lea.vmem [#allocation4], %s346
        %p348 = scmp.lt.s32.totalorder %s26, 1
        %s349 = scalar_select %p348, %s26, 1
        %s350 = smul.addr %s349, 64
        %s351 = smul.addr %s350, 8
        %s352 = scalar_lea.vmem %s0, %s351
        %p353 = scmp.lt.s32.totalorder %s26, 1
        %s354 = scalar_select %p353, %s26, 1
        %s355 = smul.addr %s354, 64
        %s356 = smul.addr %s355, 8
        %s357 = scalar_lea.vmem %s1, %s356
        %p358 = scmp.lt.s32.totalorder %s26, 1
        %s359 = scalar_select %p358, %s26, 1
        %s360 = smul.addr %s359, 4
        %s361 = scalar_lea.vmem %s2, %s360
        %p362 = scmp.lt.s32.totalorder %s26, 1
        %s363 = scalar_select %p362, %s26, 1
        %s364 = scalar_lea.vmem %s3, %s363
        %v365 = vld [vmem:[%s352] sm:$0xff]
        %v366 = vld [vmem:[%s352 + $0x8] sm:$0xff]
        %v367 = vld [vmem:[%s352 + $0x10] sm:$0xff]
        %v368 = vld [vmem:[%s352 + $0x18] sm:$0xff]
        %v369 = vld [vmem:[%s352 + $0x20] sm:$0xff]
        %v370 = vld [vmem:[%s352 + $0x28] sm:$0xff]
        %v371 = vld [vmem:[%s352 + $0x30] sm:$0xff]
        %v372 = vld [vmem:[%s352 + $0x38] sm:$0xff]
        %v373 = vld [vmem:[%s352 + $0x40] sm:$0xff]
        %v374 = vld [vmem:[%s352 + $0x48] sm:$0xff]
        %v375 = vld [vmem:[%s352 + $0x50] sm:$0xff]
        %v376 = vld [vmem:[%s352 + $0x58] sm:$0xff]
        %v377 = vld [vmem:[%s352 + $0x60] sm:$0xff]
        %v378 = vld [vmem:[%s352 + $0x68] sm:$0xff]
        %v379 = vld [vmem:[%s352 + $0x70] sm:$0xff]
        %v380 = vld [vmem:[%s352 + $0x78] sm:$0xff]
        %v381 = vld [vmem:[%s352 + $0x80] sm:$0xff]
        %v382 = vld [vmem:[%s352 + $0x88] sm:$0xff]
        %v383 = vld [vmem:[%s352 + $0x90] sm:$0xff]
        %v384 = vld [vmem:[%s352 + $0x98] sm:$0xff]
        %v385 = vld [vmem:[%s352 + $0xa0] sm:$0xff]
        %v386 = vld [vmem:[%s352 + $0xa8] sm:$0xff]
        %v387 = vld [vmem:[%s352 + $0xb0] sm:$0xff]
        %v388 = vld [vmem:[%s352 + $0xb8] sm:$0xff]
        %v389 = vld [vmem:[%s352 + $0xc0] sm:$0xff]
        %v390 = vld [vmem:[%s352 + $0xc8] sm:$0xff]
        %v391 = vld [vmem:[%s352 + $0xd0] sm:$0xff]
        %v392 = vld [vmem:[%s352 + $0xd8] sm:$0xff]
        %v393 = vld [vmem:[%s352 + $0xe0] sm:$0xff]
        %v394 = vld [vmem:[%s352 + $0xe8] sm:$0xff]
        %v395 = vld [vmem:[%s352 + $0xf0] sm:$0xff]
        %v396 = vld [vmem:[%s352 + $0xf8] sm:$0xff]
        %v397 = vld [vmem:[%s352 + $0x100] sm:$0xff]
        %v398 = vld [vmem:[%s352 + $0x108] sm:$0xff]
        %v399 = vld [vmem:[%s352 + $0x110] sm:$0xff]
        %v400 = vld [vmem:[%s352 + $0x118] sm:$0xff]
        %v401 = vld [vmem:[%s352 + $0x120] sm:$0xff]
        %v402 = vld [vmem:[%s352 + $0x128] sm:$0xff]
        %v403 = vld [vmem:[%s352 + $0x130] sm:$0xff]
        %v404 = vld [vmem:[%s352 + $0x138] sm:$0xff]
        %v405 = vld [vmem:[%s352 + $0x140] sm:$0xff]
        %v406 = vld [vmem:[%s352 + $0x148] sm:$0xff]
        %v407 = vld [vmem:[%s352 + $0x150] sm:$0xff]
        %v408 = vld [vmem:[%s352 + $0x158] sm:$0xff]
        %v409 = vld [vmem:[%s352 + $0x160] sm:$0xff]
        %v410 = vld [vmem:[%s352 + $0x168] sm:$0xff]
        %v411 = vld [vmem:[%s352 + $0x170] sm:$0xff]
        %v412 = vld [vmem:[%s352 + $0x178] sm:$0xff]
        %v413 = vld [vmem:[%s352 + $0x180] sm:$0xff]
        %v414 = vld [vmem:[%s352 + $0x188] sm:$0xff]
        %v415 = vld [vmem:[%s352 + $0x190] sm:$0xff]
        %v416 = vld [vmem:[%s352 + $0x198] sm:$0xff]
        %v417 = vld [vmem:[%s352 + $0x1a0] sm:$0xff]
        %v418 = vld [vmem:[%s352 + $0x1a8] sm:$0xff]
        %v419 = vld [vmem:[%s352 + $0x1b0] sm:$0xff]
        %v420 = vld [vmem:[%s352 + $0x1b8] sm:$0xff]
        %v421 = vld [vmem:[%s352 + $0x1c0] sm:$0xff]
        %v422 = vld [vmem:[%s352 + $0x1c8] sm:$0xff]
        %v423 = vld [vmem:[%s352 + $0x1d0] sm:$0xff]
        %v424 = vld [vmem:[%s352 + $0x1d8] sm:$0xff]
        %v425 = vld [vmem:[%s352 + $0x1e0] sm:$0xff]
        %v426 = vld [vmem:[%s352 + $0x1e8] sm:$0xff]
        %v427 = vld [vmem:[%s352 + $0x1f0] sm:$0xff]
        %v428 = vld [vmem:[%s352 + $0x1f8] sm:$0xff]
        %v429 = vld [vmem:[%s4] sm:$0xff]
        %v430 = vld [vmem:[%s4 + $0x8] sm:$0xff]
        %v431 = vld [vmem:[%s4 + $0x10] sm:$0xff]
        %v432 = vld [vmem:[%s4 + $0x18] sm:$0xff]
        %v433 = vld [vmem:[%s4 + $0x20] sm:$0xff]
        %v434 = vld [vmem:[%s4 + $0x28] sm:$0xff]
        %v435 = vld [vmem:[%s4 + $0x30] sm:$0xff]
        %v436 = vld [vmem:[%s4 + $0x38] sm:$0xff]
        %v437 = vld [vmem:[%s357] sm:$0xff]
        %v438 = vld [vmem:[%s357 + $0x8] sm:$0xff]
        %v439 = vld [vmem:[%s357 + $0x10] sm:$0xff]
        %v440 = vld [vmem:[%s357 + $0x18] sm:$0xff]
        %v441 = vld [vmem:[%s357 + $0x20] sm:$0xff]
        %v442 = vld [vmem:[%s357 + $0x28] sm:$0xff]
        %v443 = vld [vmem:[%s357 + $0x30] sm:$0xff]
        %v444 = vld [vmem:[%s357 + $0x38] sm:$0xff]
        %v445 = vld [vmem:[%s357 + $0x40] sm:$0xff]
        %v446 = vld [vmem:[%s357 + $0x48] sm:$0xff]
        %v447 = vld [vmem:[%s357 + $0x50] sm:$0xff]
        %v448 = vld [vmem:[%s357 + $0x58] sm:$0xff]
        %v449 = vld [vmem:[%s357 + $0x60] sm:$0xff]
        %v450 = vld [vmem:[%s357 + $0x68] sm:$0xff]
        %v451 = vld [vmem:[%s357 + $0x70] sm:$0xff]
        %v452 = vld [vmem:[%s357 + $0x78] sm:$0xff]
        %v453 = vld [vmem:[%s357 + $0x80] sm:$0xff]
        %v454 = vld [vmem:[%s357 + $0x88] sm:$0xff]
        %v455 = vld [vmem:[%s357 + $0x90] sm:$0xff]
        %v456 = vld [vmem:[%s357 + $0x98] sm:$0xff]
        %v457 = vld [vmem:[%s357 + $0xa0] sm:$0xff]
        %v458 = vld [vmem:[%s357 + $0xa8] sm:$0xff]
        %v459 = vld [vmem:[%s357 + $0xb0] sm:$0xff]
        %v460 = vld [vmem:[%s357 + $0xb8] sm:$0xff]
        %v461 = vld [vmem:[%s357 + $0xc0] sm:$0xff]
        %v462 = vld [vmem:[%s357 + $0xc8] sm:$0xff]
        %v463 = vld [vmem:[%s357 + $0xd0] sm:$0xff]
        %v464 = vld [vmem:[%s357 + $0xd8] sm:$0xff]
        %v465 = vld [vmem:[%s357 + $0xe0] sm:$0xff]
        %v466 = vld [vmem:[%s357 + $0xe8] sm:$0xff]
        %v467 = vld [vmem:[%s357 + $0xf0] sm:$0xff]
        %v468 = vld [vmem:[%s357 + $0xf8] sm:$0xff]
        %v469 = vld [vmem:[%s357 + $0x100] sm:$0xff]
        %v470 = vld [vmem:[%s357 + $0x108] sm:$0xff]
        %v471 = vld [vmem:[%s357 + $0x110] sm:$0xff]
        %v472 = vld [vmem:[%s357 + $0x118] sm:$0xff]
        %v473 = vld [vmem:[%s357 + $0x120] sm:$0xff]
        %v474 = vld [vmem:[%s357 + $0x128] sm:$0xff]
        %v475 = vld [vmem:[%s357 + $0x130] sm:$0xff]
        %v476 = vld [vmem:[%s357 + $0x138] sm:$0xff]
        %v477 = vld [vmem:[%s357 + $0x140] sm:$0xff]
        %v478 = vld [vmem:[%s357 + $0x148] sm:$0xff]
        %v479 = vld [vmem:[%s357 + $0x150] sm:$0xff]
        %v480 = vld [vmem:[%s357 + $0x158] sm:$0xff]
        %v481 = vld [vmem:[%s357 + $0x160] sm:$0xff]
        %v482 = vld [vmem:[%s357 + $0x168] sm:$0xff]
        %v483 = vld [vmem:[%s357 + $0x170] sm:$0xff]
        %v484 = vld [vmem:[%s357 + $0x178] sm:$0xff]
        %v485 = vld [vmem:[%s357 + $0x180] sm:$0xff]
        %v486 = vld [vmem:[%s357 + $0x188] sm:$0xff]
        %v487 = vld [vmem:[%s357 + $0x190] sm:$0xff]
        %v488 = vld [vmem:[%s357 + $0x198] sm:$0xff]
        %v489 = vld [vmem:[%s357 + $0x1a0] sm:$0xff]
        %v490 = vld [vmem:[%s357 + $0x1a8] sm:$0xff]
        %v491 = vld [vmem:[%s357 + $0x1b0] sm:$0xff]
        %v492 = vld [vmem:[%s357 + $0x1b8] sm:$0xff]
        %v493 = vld [vmem:[%s357 + $0x1c0] sm:$0xff]
        %v494 = vld [vmem:[%s357 + $0x1c8] sm:$0xff]
        %v495 = vld [vmem:[%s357 + $0x1d0] sm:$0xff]
        %v496 = vld [vmem:[%s357 + $0x1d8] sm:$0xff]
        %v497 = vld [vmem:[%s357 + $0x1e0] sm:$0xff]
        %v498 = vld [vmem:[%s357 + $0x1e8] sm:$0xff]
        %v499 = vld [vmem:[%s357 + $0x1f0] sm:$0xff]
        %v500 = vld [vmem:[%s357 + $0x1f8] sm:$0xff]
        %v501 = vld [vmem:[%s5] sm:$0xff]
        %v502 = vld [vmem:[%s5 + $0x8] sm:$0x3]
        %vm503 = vcmask 80896
        %v505 = vsel %vm503, %v437, 0
        %v508 = vsel %vm503, %v438, 0
        %v511 = vsel %vm503, %v439, 0
        %v514 = vsel %vm503, %v440, 0
        %v517 = vsel %vm503, %v441, 0
        %v520 = vsel %vm503, %v442, 0
        %v523 = vsel %vm503, %v443, 0
        %v526 = vsel %vm503, %v444, 0
        %v529 = vsel %vm503, %v445, 0
        %v532 = vsel %vm503, %v446, 0
        %v535 = vsel %vm503, %v447, 0
        %v538 = vsel %vm503, %v448, 0
        %v541 = vsel %vm503, %v449, 0
        %v544 = vsel %vm503, %v450, 0
        %v547 = vsel %vm503, %v451, 0
        %v550 = vsel %vm503, %v452, 0
        %v553 = vsel %vm503, %v453, 0
        %v556 = vsel %vm503, %v454, 0
        %v559 = vsel %vm503, %v455, 0
        %v562 = vsel %vm503, %v456, 0
        %v565 = vsel %vm503, %v457, 0
        %v568 = vsel %vm503, %v458, 0
        %v571 = vsel %vm503, %v459, 0
        %v574 = vsel %vm503, %v460, 0
        %v577 = vsel %vm503, %v461, 0
        %v580 = vsel %vm503, %v462, 0
        %v583 = vsel %vm503, %v463, 0
        %v586 = vsel %vm503, %v464, 0
        %v589 = vsel %vm503, %v465, 0
        %v592 = vsel %vm503, %v466, 0
        %v595 = vsel %vm503, %v467, 0
        %v598 = vsel %vm503, %v468, 0
        %v601 = vsel %vm503, %v469, 0
        %v604 = vsel %vm503, %v470, 0
        %v607 = vsel %vm503, %v471, 0
        %v610 = vsel %vm503, %v472, 0
        %v613 = vsel %vm503, %v473, 0
        %v616 = vsel %vm503, %v474, 0
        %v619 = vsel %vm503, %v475, 0
        %v622 = vsel %vm503, %v476, 0
        %v625 = vsel %vm503, %v477, 0
        %v628 = vsel %vm503, %v478, 0
        %v631 = vsel %vm503, %v479, 0
        %v634 = vsel %vm503, %v480, 0
        %v637 = vsel %vm503, %v481, 0
        %v640 = vsel %vm503, %v482, 0
        %v643 = vsel %vm503, %v483, 0
        %v646 = vsel %vm503, %v484, 0
        %v649 = vsel %vm503, %v485, 0
        %v652 = vsel %vm503, %v486, 0
        %v655 = vsel %vm503, %v487, 0
        %v658 = vsel %vm503, %v488, 0
        %v661 = vsel %vm503, %v489, 0
        %v664 = vsel %vm503, %v490, 0
        %v667 = vsel %vm503, %v491, 0
        %v670 = vsel %vm503, %v492, 0
        %v673 = vsel %vm503, %v493, 0
        %v676 = vsel %vm503, %v494, 0
        %v679 = vsel %vm503, %v495, 0
        %v682 = vsel %vm503, %v496, 0
        %v685 = vsel %vm503, %v497, 0
        %v688 = vsel %vm503, %v498, 0
        %v691 = vsel %vm503, %v499, 0
        %v694 = vsel %vm503, %v500, 0
        %vm696 = vcmask 1041408
        %v698 = vsel %vm696, %v502, 0
        %700 = vmatprep.subr.mxu0 0.0
        %701 = vmatpush1.msra.mxu0 %v501
        %702 = vmatprep.subr.mxu0 0.0
        %703 = vmatpush1.msra.mxu0 %v698
        %704 = vmatprep.subr.mxu0 0.0
        %705 = vmatpush1.msra.mxu0 0.0
        %706 = vmatprep.subr.mxu0 0.0
        %707 = vmatpush1.msra.mxu0 0.0
        %708 = vmatprep.subr.mxu0 0.0
        %709 = vmatpush1.msra.mxu0 0.0
        %710 = vmatprep.subr.mxu0 0.0
        %711 = vmatpush1.msra.mxu0 0.0
        %712 = vmatprep.subr.mxu0 0.0
        %713 = vmatpush1.msra.mxu0 0.0
        %714 = vmatprep.subr.mxu0 0.0
        %715 = vmatpush1.msra.mxu0 0.0
        %716 = vmatprep.subr.mxu0 0.0
        %717 = vmatpush1.msra.mxu0 0.0
        %718 = vmatprep.subr.mxu0 0.0
        %719 = vmatpush1.msra.mxu0 0.0
        %720 = vmatprep.subr.mxu0 0.0
        %721 = vmatpush1.msra.mxu0 0.0
        %722 = vmatprep.subr.mxu0 0.0
        %723 = vmatpush1.msra.mxu0 0.0
        %724 = vmatprep.subr.mxu0 0.0
        %725 = vmatpush1.msra.mxu0 0.0
        %726 = vmatprep.subr.mxu0 0.0
        %727 = vmatpush1.msra.mxu0 0.0
        %728 = vmatprep.subr.mxu0 0.0
        %729 = vmatpush1.msra.mxu0 0.0
        %730 = vmatprep.subr.mxu0 0.0
        %731 = vmatpush1.msra.mxu0 0.0
        %732 = vmatprep.subr.mxu0 0.0
        %733 = vmatpush1.msra.mxu0 0.0
        %734 = vmatprep.subr.mxu0 0.0
        %735 = vmatpush1.msra.mxu0 0.0
        %736 = vmatprep.subr.mxu0 0.0
        %737 = vmatpush1.msra.mxu0 0.0
        %738 = vmatprep.subr.mxu0 0.0
        %739 = vmatpush1.msra.mxu0 0.0
        %740 = vmatprep.subr.mxu0 0.0
        %741 = vmatpush1.msra.mxu0 0.0
        %742 = vmatprep.subr.mxu0 0.0
        %743 = vmatpush1.msra.mxu0 0.0
        %744 = vmatprep.subr.mxu0 0.0
        %745 = vmatpush1.msra.mxu0 0.0
        %746 = vmatprep.subr.mxu0 0.0
        %747 = vmatpush1.msra.mxu0 0.0
        %748 = vmatprep.subr.mxu0 0.0
        %749 = vmatpush1.msra.mxu0 0.0
        %750 = vmatprep.subr.mxu0 0.0
        %751 = vmatpush1.msra.mxu0 0.0
        %752 = vmatprep.subr.mxu0 0.0
        %753 = vmatpush1.msra.mxu0 0.0
        %754 = vmatprep.subr.mxu0 0.0
        %755 = vmatpush1.msra.mxu0 0.0
        %756 = vmatprep.subr.mxu0 0.0
        %757 = vmatpush1.msra.mxu0 0.0
        %758 = vmatprep.subr.mxu0 0.0
        %759 = vmatpush1.msra.mxu0 0.0
        %760 = vmatprep.subr.mxu0 0.0
        %761 = vmatpush1.msra.mxu0 0.0
        %762 = vmatprep.subr.mxu0 0.0
        %763 = vmatpush1.msra.mxu0 0.0
        %764 = vmatprep.mubr.f32.mxu0 0.0
        %765 = vmatmul.mubr.f32.gmra.mrb[0].mxu0 %v505
        %v766 = vpop.f32.mrb[0].mxu0
        %v767 = vadd.f32 0.0, %v766
        %v768 = vpop.f32.mrb[0].mxu0
        %769 = vmatprep.mubr.f32.mxu0 0.0
        %770 = vmatmul.mubr.f32.gmra.mrb[0].mxu0 %v508
        %v771 = vpop.f32.mrb[0].mxu0
        %v772 = vadd.f32 0.0, %v771
        %v773 = vpop.f32.mrb[0].mxu0
        %774 = vmatprep.mubr.f32.mxu0 0.0
        %775 = vmatmul.mubr.f32.gmra.mrb[0].mxu0 %v511
        %v776 = vpop.f32.mrb[0].mxu0
        %v777 = vadd.f32 0.0, %v776
        %v778 = vpop.f32.mrb[0].mxu0
        %779 = vmatprep.mubr.f32.mxu0 0.0
        %780 = vmatmul.mubr.f32.gmra.mrb[0].mxu0 %v514
        %v781 = vpop.f32.mrb[0].mxu0
        %v782 = vadd.f32 0.0, %v781
        %v783 = vpop.f32.mrb[0].mxu0
        %784 = vmatprep.mubr.f32.mxu0 0.0
        %785 = vmatmul.mubr.f32.gmra.mrb[0].mxu0 %v517
        %v786 = vpop.f32.mrb[0].mxu0
        %v787 = vadd.f32 0.0, %v786
        %v788 = vpop.f32.mrb[0].mxu0
        %789 = vmatprep.mubr.f32.mxu0 0.0
        %790 = vmatmul.mubr.f32.gmra.mrb[0].mxu0 %v520
        %v791 = vpop.f32.mrb[0].mxu0
        %v792 = vadd.f32 0.0, %v791
        %v793 = vpop.f32.mrb[0].mxu0
        %794 = vmatprep.mubr.f32.mxu0 0.0
        %795 = vmatmul.mubr.f32.gmra.mrb[0].mxu0 %v523
        %v796 = vpop.f32.mrb[0].mxu0
        %v797 = vadd.f32 0.0, %v796
        %v798 = vpop.f32.mrb[0].mxu0
        %799 = vmatprep.mubr.f32.mxu0 0.0
        %800 = vmatmul.mubr.f32.gmra.mrb[0].mxu0 %v526
        %v801 = vpop.f32.mrb[0].mxu0
        %v802 = vadd.f32 0.0, %v801
        %v803 = vpop.f32.mrb[0].mxu0
        %804 = vmatprep.mubr.f32.mxu0 0.0
        %805 = vmatmul.mubr.f32.gmra.mrb[0].mxu0 %v529
        %v806 = vpop.f32.mrb[0].mxu0
        %v807 = vadd.f32 0.0, %v806
        %v808 = vpop.f32.mrb[0].mxu0
        %809 = vmatprep.mubr.f32.mxu0 0.0
        %810 = vmatmul.mubr.f32.gmra.mrb[0].mxu0 %v532
        %v811 = vpop.f32.mrb[0].mxu0
        %v812 = vadd.f32 0.0, %v811
        %v813 = vpop.f32.mrb[0].mxu0
        %814 = vmatprep.mubr.f32.mxu0 0.0
        %815 = vmatmul.mubr.f32.gmra.mrb[0].mxu0 %v535
        %v816 = vpop.f32.mrb[0].mxu0
        %v817 = vadd.f32 0.0, %v816
        %v818 = vpop.f32.mrb[0].mxu0
        %819 = vmatprep.mubr.f32.mxu0 0.0
        %820 = vmatmul.mubr.f32.gmra.mrb[0].mxu0 %v538
        %v821 = vpop.f32.mrb[0].mxu0
        %v822 = vadd.f32 0.0, %v821
        %v823 = vpop.f32.mrb[0].mxu0
        %824 = vmatprep.mubr.f32.mxu0 0.0
        %825 = vmatmul.mubr.f32.gmra.mrb[0].mxu0 %v541
        %v826 = vpop.f32.mrb[0].mxu0
        %v827 = vadd.f32 0.0, %v826
        %v828 = vpop.f32.mrb[0].mxu0
        %829 = vmatprep.mubr.f32.mxu0 0.0
        %830 = vmatmul.mubr.f32.gmra.mrb[0].mxu0 %v544
        %v831 = vpop.f32.mrb[0].mxu0
        %v832 = vadd.f32 0.0, %v831
        %v833 = vpop.f32.mrb[0].mxu0
        %834 = vmatprep.mubr.f32.mxu0 0.0
        %835 = vmatmul.mubr.f32.gmra.mrb[0].mxu0 %v547
        %v836 = vpop.f32.mrb[0].mxu0
        %v837 = vadd.f32 0.0, %v836
        %v838 = vpop.f32.mrb[0].mxu0
        %839 = vmatprep.mubr.f32.mxu0 0.0
        %840 = vmatmul.mubr.f32.gmra.mrb[0].mxu0 %v550
        %v841 = vpop.f32.mrb[0].mxu0
        %v842 = vadd.f32 0.0, %v841
        %v843 = vpop.f32.mrb[0].mxu0
        %844 = vmatprep.mubr.f32.mxu0 0.0
        %845 = vmatmul.mubr.f32.gmra.mrb[0].mxu0 %v553
        %v846 = vpop.f32.mrb[0].mxu0
        %v847 = vadd.f32 0.0, %v846
        %v848 = vpop.f32.mrb[0].mxu0
        %849 = vmatprep.mubr.f32.mxu0 0.0
        %850 = vmatmul.mubr.f32.gmra.mrb[0].mxu0 %v556
        %v851 = vpop.f32.mrb[0].mxu0
        %v852 = vadd.f32 0.0, %v851
        %v853 = vpop.f32.mrb[0].mxu0
        %854 = vmatprep.mubr.f32.mxu0 0.0
        %855 = vmatmul.mubr.f32.gmra.mrb[0].mxu0 %v559
        %v856 = vpop.f32.mrb[0].mxu0
        %v857 = vadd.f32 0.0, %v856
        %v858 = vpop.f32.mrb[0].mxu0
        %859 = vmatprep.mubr.f32.mxu0 0.0
        %860 = vmatmul.mubr.f32.gmra.mrb[0].mxu0 %v562
        %v861 = vpop.f32.mrb[0].mxu0
        %v862 = vadd.f32 0.0, %v861
        %v863 = vpop.f32.mrb[0].mxu0
        %864 = vmatprep.mubr.f32.mxu0 0.0
        %865 = vmatmul.mubr.f32.gmra.mrb[0].mxu0 %v565
        %v866 = vpop.f32.mrb[0].mxu0
        %v867 = vadd.f32 0.0, %v866
        %v868 = vpop.f32.mrb[0].mxu0
        %869 = vmatprep.mubr.f32.mxu0 0.0
        %870 = vmatmul.mubr.f32.gmra.mrb[0].mxu0 %v568
        %v871 = vpop.f32.mrb[0].mxu0
        %v872 = vadd.f32 0.0, %v871
        %v873 = vpop.f32.mrb[0].mxu0
        %874 = vmatprep.mubr.f32.mxu0 0.0
        %875 = vmatmul.mubr.f32.gmra.mrb[0].mxu0 %v571
        %v876 = vpop.f32.mrb[0].mxu0
        %v877 = vadd.f32 0.0, %v876
        %v878 = vpop.f32.mrb[0].mxu0
        %879 = vmatprep.mubr.f32.mxu0 0.0
        %880 = vmatmul.mubr.f32.gmra.mrb[0].mxu0 %v574
        %v881 = vpop.f32.mrb[0].mxu0
        %v882 = vadd.f32 0.0, %v881
        %v883 = vpop.f32.mrb[0].mxu0
        %884 = vmatprep.mubr.f32.mxu0 0.0
        %885 = vmatmul.mubr.f32.gmra.mrb[0].mxu0 %v577
        %v886 = vpop.f32.mrb[0].mxu0
        %v887 = vadd.f32 0.0, %v886
        %v888 = vpop.f32.mrb[0].mxu0
        %889 = vmatprep.mubr.f32.mxu0 0.0
        %890 = vmatmul.mubr.f32.gmra.mrb[0].mxu0 %v580
        %v891 = vpop.f32.mrb[0].mxu0
        %v892 = vadd.f32 0.0, %v891
        %v893 = vpop.f32.mrb[0].mxu0
        %894 = vmatprep.mubr.f32.mxu0 0.0
        %895 = vmatmul.mubr.f32.gmra.mrb[0].mxu0 %v583
        %v896 = vpop.f32.mrb[0].mxu0
        %v897 = vadd.f32 0.0, %v896
        %v898 = vpop.f32.mrb[0].mxu0
        %899 = vmatprep.mubr.f32.mxu0 0.0
        %900 = vmatmul.mubr.f32.gmra.mrb[0].mxu0 %v586
        %v901 = vpop.f32.mrb[0].mxu0
        %v902 = vadd.f32 0.0, %v901
        %v903 = vpop.f32.mrb[0].mxu0
        %904 = vmatprep.mubr.f32.mxu0 0.0
        %905 = vmatmul.mubr.f32.gmra.mrb[0].mxu0 %v589
        %v906 = vpop.f32.mrb[0].mxu0
        %v907 = vadd.f32 0.0, %v906
        %v908 = vpop.f32.mrb[0].mxu0
        %909 = vmatprep.mubr.f32.mxu0 0.0
        %910 = vmatmul.mubr.f32.gmra.mrb[0].mxu0 %v592
        %v911 = vpop.f32.mrb[0].mxu0
        %v912 = vadd.f32 0.0, %v911
        %v913 = vpop.f32.mrb[0].mxu0
        %914 = vmatprep.mubr.f32.mxu0 0.0
        %915 = vmatmul.mubr.f32.gmra.mrb[0].mxu0 %v595
        %v916 = vpop.f32.mrb[0].mxu0
        %v917 = vadd.f32 0.0, %v916
        %v918 = vpop.f32.mrb[0].mxu0
        %919 = vmatprep.mubr.f32.mxu0 0.0
        %920 = vmatmul.mubr.f32.gmra.mrb[0].mxu0 %v598
        %v921 = vpop.f32.mrb[0].mxu0
        %v922 = vadd.f32 0.0, %v921
        %v923 = vpop.f32.mrb[0].mxu0
        %924 = vmatprep.mubr.f32.mxu0 0.0
        %925 = vmatmul.mubr.f32.gmra.mrb[0].mxu0 %v601
        %v926 = vpop.f32.mrb[0].mxu0
        %v927 = vadd.f32 0.0, %v926
        %v928 = vpop.f32.mrb[0].mxu0
        %929 = vmatprep.mubr.f32.mxu0 0.0
        %930 = vmatmul.mubr.f32.gmra.mrb[0].mxu0 %v604
        %v931 = vpop.f32.mrb[0].mxu0
        %v932 = vadd.f32 0.0, %v931
        %v933 = vpop.f32.mrb[0].mxu0
        %934 = vmatprep.mubr.f32.mxu0 0.0
        %935 = vmatmul.mubr.f32.gmra.mrb[0].mxu0 %v607
        %v936 = vpop.f32.mrb[0].mxu0
        %v937 = vadd.f32 0.0, %v936
        %v938 = vpop.f32.mrb[0].mxu0
        %939 = vmatprep.mubr.f32.mxu0 0.0
        %940 = vmatmul.mubr.f32.gmra.mrb[0].mxu0 %v610
        %v941 = vpop.f32.mrb[0].mxu0
        %v942 = vadd.f32 0.0, %v941
        %v943 = vpop.f32.mrb[0].mxu0
        %944 = vmatprep.mubr.f32.mxu0 0.0
        %945 = vmatmul.mubr.f32.gmra.mrb[0].mxu0 %v613
        %v946 = vpop.f32.mrb[0].mxu0
        %v947 = vadd.f32 0.0, %v946
        %v948 = vpop.f32.mrb[0].mxu0
        %949 = vmatprep.mubr.f32.mxu0 0.0
        %950 = vmatmul.mubr.f32.gmra.mrb[0].mxu0 %v616
        %v951 = vpop.f32.mrb[0].mxu0
        %v952 = vadd.f32 0.0, %v951
        %v953 = vpop.f32.mrb[0].mxu0
        %954 = vmatprep.mubr.f32.mxu0 0.0
        %955 = vmatmul.mubr.f32.gmra.mrb[0].mxu0 %v619
        %v956 = vpop.f32.mrb[0].mxu0
        %v957 = vadd.f32 0.0, %v956
        %v958 = vpop.f32.mrb[0].mxu0
        %959 = vmatprep.mubr.f32.mxu0 0.0
        %960 = vmatmul.mubr.f32.gmra.mrb[0].mxu0 %v622
        %v961 = vpop.f32.mrb[0].mxu0
        %v962 = vadd.f32 0.0, %v961
        %v963 = vpop.f32.mrb[0].mxu0
        %964 = vmatprep.mubr.f32.mxu0 0.0
        %965 = vmatmul.mubr.f32.gmra.mrb[0].mxu0 %v625
        %v966 = vpop.f32.mrb[0].mxu0
        %v967 = vadd.f32 0.0, %v966
        %v968 = vpop.f32.mrb[0].mxu0
        %969 = vmatprep.mubr.f32.mxu0 0.0
        %970 = vmatmul.mubr.f32.gmra.mrb[0].mxu0 %v628
        %v971 = vpop.f32.mrb[0].mxu0
        %v972 = vadd.f32 0.0, %v971
        %v973 = vpop.f32.mrb[0].mxu0
        %974 = vmatprep.mubr.f32.mxu0 0.0
        %975 = vmatmul.mubr.f32.gmra.mrb[0].mxu0 %v631
        %v976 = vpop.f32.mrb[0].mxu0
        %v977 = vadd.f32 0.0, %v976
        %v978 = vpop.f32.mrb[0].mxu0
        %979 = vmatprep.mubr.f32.mxu0 0.0
        %980 = vmatmul.mubr.f32.gmra.mrb[0].mxu0 %v634
        %v981 = vpop.f32.mrb[0].mxu0
        %v982 = vadd.f32 0.0, %v981
        %v983 = vpop.f32.mrb[0].mxu0
        %984 = vmatprep.mubr.f32.mxu0 0.0
        %985 = vmatmul.mubr.f32.gmra.mrb[0].mxu0 %v637
        %v986 = vpop.f32.mrb[0].mxu0
        %v987 = vadd.f32 0.0, %v986
        %v988 = vpop.f32.mrb[0].mxu0
        %989 = vmatprep.mubr.f32.mxu0 0.0
        %990 = vmatmul.mubr.f32.gmra.mrb[0].mxu0 %v640
        %v991 = vpop.f32.mrb[0].mxu0
        %v992 = vadd.f32 0.0, %v991
        %v993 = vpop.f32.mrb[0].mxu0
        %994 = vmatprep.mubr.f32.mxu0 0.0
        %995 = vmatmul.mubr.f32.gmra.mrb[0].mxu0 %v643
        %v996 = vpop.f32.mrb[0].mxu0
        %v997 = vadd.f32 0.0, %v996
        %v998 = vpop.f32.mrb[0].mxu0
        %999 = vmatprep.mubr.f32.mxu0 0.0
        %1000 = vmatmul.mubr.f32.gmra.mrb[0].mxu0 %v646
        %v1001 = vpop.f32.mrb[0].mxu0
        %v1002 = vadd.f32 0.0, %v1001
        %v1003 = vpop.f32.mrb[0].mxu0
        %1004 = vmatprep.mubr.f32.mxu0 0.0
        %1005 = vmatmul.mubr.f32.gmra.mrb[0].mxu0 %v649
        %v1006 = vpop.f32.mrb[0].mxu0
        %v1007 = vadd.f32 0.0, %v1006
        %v1008 = vpop.f32.mrb[0].mxu0
        %1009 = vmatprep.mubr.f32.mxu0 0.0
        %1010 = vmatmul.mubr.f32.gmra.mrb[0].mxu0 %v652
        %v1011 = vpop.f32.mrb[0].mxu0
        %v1012 = vadd.f32 0.0, %v1011
        %v1013 = vpop.f32.mrb[0].mxu0
        %1014 = vmatprep.mubr.f32.mxu0 0.0
        %1015 = vmatmul.mubr.f32.gmra.mrb[0].mxu0 %v655
        %v1016 = vpop.f32.mrb[0].mxu0
        %v1017 = vadd.f32 0.0, %v1016
        %v1018 = vpop.f32.mrb[0].mxu0
        %1019 = vmatprep.mubr.f32.mxu0 0.0
        %1020 = vmatmul.mubr.f32.gmra.mrb[0].mxu0 %v658
        %v1021 = vpop.f32.mrb[0].mxu0
        %v1022 = vadd.f32 0.0, %v1021
        %v1023 = vpop.f32.mrb[0].mxu0
        %1024 = vmatprep.mubr.f32.mxu0 0.0
        %1025 = vmatmul.mubr.f32.gmra.mrb[0].mxu0 %v661
        %v1026 = vpop.f32.mrb[0].mxu0
        %v1027 = vadd.f32 0.0, %v1026
        %v1028 = vpop.f32.mrb[0].mxu0
        %1029 = vmatprep.mubr.f32.mxu0 0.0
        %1030 = vmatmul.mubr.f32.gmra.mrb[0].mxu0 %v664
        %v1031 = vpop.f32.mrb[0].mxu0
        %v1032 = vadd.f32 0.0, %v1031
        %v1033 = vpop.f32.mrb[0].mxu0
        %1034 = vmatprep.mubr.f32.mxu0 0.0
        %1035 = vmatmul.mubr.f32.gmra.mrb[0].mxu0 %v667
        %v1036 = vpop.f32.mrb[0].mxu0
        %v1037 = vadd.f32 0.0, %v1036
        %v1038 = vpop.f32.mrb[0].mxu0
        %1039 = vmatprep.mubr.f32.mxu0 0.0
        %1040 = vmatmul.mubr.f32.gmra.mrb[0].mxu0 %v670
        %v1041 = vpop.f32.mrb[0].mxu0
        %v1042 = vadd.f32 0.0, %v1041
        %v1043 = vpop.f32.mrb[0].mxu0
        %1044 = vmatprep.mubr.f32.mxu0 0.0
        %1045 = vmatmul.mubr.f32.gmra.mrb[0].mxu0 %v673
        %v1046 = vpop.f32.mrb[0].mxu0
        %v1047 = vadd.f32 0.0, %v1046
        %v1048 = vpop.f32.mrb[0].mxu0
        %1049 = vmatprep.mubr.f32.mxu0 0.0
        %1050 = vmatmul.mubr.f32.gmra.mrb[0].mxu0 %v676
        %v1051 = vpop.f32.mrb[0].mxu0
        %v1052 = vadd.f32 0.0, %v1051
        %v1053 = vpop.f32.mrb[0].mxu0
        %1054 = vmatprep.mubr.f32.mxu0 0.0
        %1055 = vmatmul.mubr.f32.gmra.mrb[0].mxu0 %v679
        %v1056 = vpop.f32.mrb[0].mxu0
        %v1057 = vadd.f32 0.0, %v1056
        %v1058 = vpop.f32.mrb[0].mxu0
        %1059 = vmatprep.mubr.f32.mxu0 0.0
        %1060 = vmatmul.mubr.f32.gmra.mrb[0].mxu0 %v682
        %v1061 = vpop.f32.mrb[0].mxu0
        %v1062 = vadd.f32 0.0, %v1061
        %v1063 = vpop.f32.mrb[0].mxu0
        %1064 = vmatprep.mubr.f32.mxu0 0.0
        %1065 = vmatmul.mubr.f32.gmra.mrb[0].mxu0 %v685
        %v1066 = vpop.f32.mrb[0].mxu0
        %v1067 = vadd.f32 0.0, %v1066
        %v1068 = vpop.f32.mrb[0].mxu0
        %1069 = vmatprep.mubr.f32.mxu0 0.0
        %1070 = vmatmul.mubr.f32.gmra.mrb[0].mxu0 %v688
        %v1071 = vpop.f32.mrb[0].mxu0
        %v1072 = vadd.f32 0.0, %v1071
        %v1073 = vpop.f32.mrb[0].mxu0
        %1074 = vmatprep.mubr.f32.mxu0 0.0
        %1075 = vmatmul.mubr.f32.gmra.mrb[0].mxu0 %v691
        %v1076 = vpop.f32.mrb[0].mxu0
        %v1077 = vadd.f32 0.0, %v1076
        %v1078 = vpop.f32.mrb[0].mxu0
        %1079 = vmatprep.mubr.f32.mxu0 0.0
        %1080 = vmatmul.mubr.f32.gmra.mrb[0].mxu0 %v694
        %v1081 = vpop.f32.mrb[0].mxu0
        %v1082 = vadd.f32 0.0, %v1081
        %v1083 = vpop.f32.mrb[0].mxu0
        %1084 = vdwg.mxu0
        %vm1085 = vcmask 523264
        %v1087 = vsel %vm1085, %v365, 0
        %v1090 = vsel %vm1085, %v366, 0
        %v1093 = vsel %vm1085, %v367, 0
        %v1096 = vsel %vm1085, %v368, 0
        %v1099 = vsel %vm1085, %v369, 0
        %v1102 = vsel %vm1085, %v370, 0
        %v1105 = vsel %vm1085, %v371, 0
        %v1108 = vsel %vm1085, %v372, 0
        %v1111 = vsel %vm1085, %v373, 0
        %v1114 = vsel %vm1085, %v374, 0
        %v1117 = vsel %vm1085, %v375, 0
        %v1120 = vsel %vm1085, %v376, 0
        %v1123 = vsel %vm1085, %v377, 0
        %v1126 = vsel %vm1085, %v378, 0
        %v1129 = vsel %vm1085, %v379, 0
        %v1132 = vsel %vm1085, %v380, 0
        %v1135 = vsel %vm1085, %v381, 0
        %v1138 = vsel %vm1085, %v382, 0
        %v1141 = vsel %vm1085, %v383, 0
        %v1144 = vsel %vm1085, %v384, 0
        %v1147 = vsel %vm1085, %v385, 0
        %v1150 = vsel %vm1085, %v386, 0
        %v1153 = vsel %vm1085, %v387, 0
        %v1156 = vsel %vm1085, %v388, 0
        %v1159 = vsel %vm1085, %v389, 0
        %v1162 = vsel %vm1085, %v390, 0
        %v1165 = vsel %vm1085, %v391, 0
        %v1168 = vsel %vm1085, %v392, 0
        %v1171 = vsel %vm1085, %v393, 0
        %v1174 = vsel %vm1085, %v394, 0
        %v1177 = vsel %vm1085, %v395, 0
        %v1180 = vsel %vm1085, %v396, 0
        %v1183 = vsel %vm1085, %v397, 0
        %v1186 = vsel %vm1085, %v398, 0
        %v1189 = vsel %vm1085, %v399, 0
        %v1192 = vsel %vm1085, %v400, 0
        %v1195 = vsel %vm1085, %v401, 0
        %v1198 = vsel %vm1085, %v402, 0
        %v1201 = vsel %vm1085, %v403, 0
        %v1204 = vsel %vm1085, %v404, 0
        %v1207 = vsel %vm1085, %v405, 0
        %v1210 = vsel %vm1085, %v406, 0
        %v1213 = vsel %vm1085, %v407, 0
        %v1216 = vsel %vm1085, %v408, 0
        %v1219 = vsel %vm1085, %v409, 0
        %v1222 = vsel %vm1085, %v410, 0
        %v1225 = vsel %vm1085, %v411, 0
        %v1228 = vsel %vm1085, %v412, 0
        %v1231 = vsel %vm1085, %v413, 0
        %v1234 = vsel %vm1085, %v414, 0
        %v1237 = vsel %vm1085, %v415, 0
        %v1240 = vsel %vm1085, %v416, 0
        %v1243 = vsel %vm1085, %v417, 0
        %v1246 = vsel %vm1085, %v418, 0
        %v1249 = vsel %vm1085, %v419, 0
        %v1252 = vsel %vm1085, %v420, 0
        %v1255 = vsel %vm1085, %v421, 0
        %v1258 = vsel %vm1085, %v422, 0
        %v1261 = vsel %vm1085, %v423, 0
        %v1264 = vsel %vm1085, %v424, 0
        %v1267 = vsel %vm1085, %v425, 0
        %v1270 = vsel %vm1085, %v426, 0
        %v1273 = vsel %vm1085, %v427, 0
        %v1276 = vsel %vm1085, %v428, 0
        %1278 = vmatprep.subr.mxu0 0.0
        %1279 = vmatpush1.msra.mxu0 %v429
        %1280 = vmatprep.subr.mxu0 0.0
        %1281 = vmatpush1.msra.mxu0 %v430
        %1282 = vmatprep.subr.mxu0 0.0
        %1283 = vmatpush1.msra.mxu0 %v431
        %1284 = vmatprep.subr.mxu0 0.0
        %1285 = vmatpush1.msra.mxu0 %v432
        %1286 = vmatprep.subr.mxu0 0.0
        %1287 = vmatpush1.msra.mxu0 %v433
        %1288 = vmatprep.subr.mxu0 0.0
        %1289 = vmatpush1.msra.mxu0 %v434
        %1290 = vmatprep.subr.mxu0 0.0
        %1291 = vmatpush1.msra.mxu0 %v435
        %1292 = vmatprep.subr.mxu0 0.0
        %1293 = vmatpush1.msra.mxu0 %v436
        %1294 = vmatprep.subr.mxu0 0.0
        %1295 = vmatpush1.msra.mxu0 0.0
        %1296 = vmatprep.subr.mxu0 0.0
        %1297 = vmatpush1.msra.mxu0 0.0
        %1298 = vmatprep.subr.mxu0 0.0
        %1299 = vmatpush1.msra.mxu0 0.0
        %1300 = vmatprep.subr.mxu0 0.0
        %1301 = vmatpush1.msra.mxu0 0.0
        %1302 = vmatprep.subr.mxu0 0.0
        %1303 = vmatpush1.msra.mxu0 0.0
        %1304 = vmatprep.subr.mxu0 0.0
        %1305 = vmatpush1.msra.mxu0 0.0
        %1306 = vmatprep.subr.mxu0 0.0
        %1307 = vmatpush1.msra.mxu0 0.0
        %1308 = vmatprep.subr.mxu0 0.0
        %1309 = vmatpush1.msra.mxu0 0.0
        %1310 = vmatprep.subr.mxu0 0.0
        %1311 = vmatpush1.msra.mxu0 0.0
        %1312 = vmatprep.subr.mxu0 0.0
        %1313 = vmatpush1.msra.mxu0 0.0
        %1314 = vmatprep.subr.mxu0 0.0
        %1315 = vmatpush1.msra.mxu0 0.0
        %1316 = vmatprep.subr.mxu0 0.0
        %1317 = vmatpush1.msra.mxu0 0.0
        %1318 = vmatprep.subr.mxu0 0.0
        %1319 = vmatpush1.msra.mxu0 0.0
        %1320 = vmatprep.subr.mxu0 0.0
        %1321 = vmatpush1.msra.mxu0 0.0
        %1322 = vmatprep.subr.mxu0 0.0
        %1323 = vmatpush1.msra.mxu0 0.0
        %1324 = vmatprep.subr.mxu0 0.0
        %1325 = vmatpush1.msra.mxu0 0.0
        %1326 = vmatprep.subr.mxu0 0.0
        %1327 = vmatpush1.msra.mxu0 0.0
        %1328 = vmatprep.subr.mxu0 0.0
        %1329 = vmatpush1.msra.mxu0 0.0
        %1330 = vmatprep.subr.mxu0 0.0
        %1331 = vmatpush1.msra.mxu0 0.0
        %1332 = vmatprep.subr.mxu0 0.0
        %1333 = vmatpush1.msra.mxu0 0.0
        %1334 = vmatprep.subr.mxu0 0.0
        %1335 = vmatpush1.msra.mxu0 0.0
        %1336 = vmatprep.subr.mxu0 0.0
        %1337 = vmatpush1.msra.mxu0 0.0
        %1338 = vmatprep.subr.mxu0 0.0
        %1339 = vmatpush1.msra.mxu0 0.0
        %1340 = vmatprep.subr.mxu0 0.0
        %1341 = vmatpush1.msra.mxu0 0.0
        %1342 = vmatprep.mubr.f32.mxu0 0.0
        %1343 = vmatmul.mubr.f32.gmra.mrb[0].mxu0 %v1087
        %v1344 = vpop.f32.mrb[0].mxu0
        %v1345 = vadd.f32 %v767, %v1344
        %v1346 = vpop.f32.mrb[0].mxu0
        %1347 = vmatprep.mubr.f32.mxu0 0.0
        %1348 = vmatmul.mubr.f32.gmra.mrb[0].mxu0 %v1090
        %v1349 = vpop.f32.mrb[0].mxu0
        %v1350 = vadd.f32 %v772, %v1349
        %v1351 = vpop.f32.mrb[0].mxu0
        %1352 = vmatprep.mubr.f32.mxu0 0.0
        %1353 = vmatmul.mubr.f32.gmra.mrb[0].mxu0 %v1093
        %v1354 = vpop.f32.mrb[0].mxu0
        %v1355 = vadd.f32 %v777, %v1354
        %v1356 = vpop.f32.mrb[0].mxu0
        %1357 = vmatprep.mubr.f32.mxu0 0.0
        %1358 = vmatmul.mubr.f32.gmra.mrb[0].mxu0 %v1096
        %v1359 = vpop.f32.mrb[0].mxu0
        %v1360 = vadd.f32 %v782, %v1359
        %v1361 = vpop.f32.mrb[0].mxu0
        %1362 = vmatprep.mubr.f32.mxu0 0.0
        %1363 = vmatmul.mubr.f32.gmra.mrb[0].mxu0 %v1099
        %v1364 = vpop.f32.mrb[0].mxu0
        %v1365 = vadd.f32 %v787, %v1364
        %v1366 = vpop.f32.mrb[0].mxu0
        %1367 = vmatprep.mubr.f32.mxu0 0.0
        %1368 = vmatmul.mubr.f32.gmra.mrb[0].mxu0 %v1102
        %v1369 = vpop.f32.mrb[0].mxu0
        %v1370 = vadd.f32 %v792, %v1369
        %v1371 = vpop.f32.mrb[0].mxu0
        %1372 = vmatprep.mubr.f32.mxu0 0.0
        %1373 = vmatmul.mubr.f32.gmra.mrb[0].mxu0 %v1105
        %v1374 = vpop.f32.mrb[0].mxu0
        %v1375 = vadd.f32 %v797, %v1374
        %v1376 = vpop.f32.mrb[0].mxu0
        %1377 = vmatprep.mubr.f32.mxu0 0.0
        %1378 = vmatmul.mubr.f32.gmra.mrb[0].mxu0 %v1108
        %v1379 = vpop.f32.mrb[0].mxu0
        %v1380 = vadd.f32 %v802, %v1379
        %v1381 = vpop.f32.mrb[0].mxu0
        %1382 = vmatprep.mubr.f32.mxu0 0.0
        %1383 = vmatmul.mubr.f32.gmra.mrb[0].mxu0 %v1111
        %v1384 = vpop.f32.mrb[0].mxu0
        %v1385 = vadd.f32 %v807, %v1384
        %v1386 = vpop.f32.mrb[0].mxu0
        %1387 = vmatprep.mubr.f32.mxu0 0.0
        %1388 = vmatmul.mubr.f32.gmra.mrb[0].mxu0 %v1114
        %v1389 = vpop.f32.mrb[0].mxu0
        %v1390 = vadd.f32 %v812, %v1389
        %v1391 = vpop.f32.mrb[0].mxu0
        %1392 = vmatprep.mubr.f32.mxu0 0.0
        %1393 = vmatmul.mubr.f32.gmra.mrb[0].mxu0 %v1117
        %v1394 = vpop.f32.mrb[0].mxu0
        %v1395 = vadd.f32 %v817, %v1394
        %v1396 = vpop.f32.mrb[0].mxu0
        %1397 = vmatprep.mubr.f32.mxu0 0.0
        %1398 = vmatmul.mubr.f32.gmra.mrb[0].mxu0 %v1120
        %v1399 = vpop.f32.mrb[0].mxu0
        %v1400 = vadd.f32 %v822, %v1399
        %v1401 = vpop.f32.mrb[0].mxu0
        %1402 = vmatprep.mubr.f32.mxu0 0.0
        %1403 = vmatmul.mubr.f32.gmra.mrb[0].mxu0 %v1123
        %v1404 = vpop.f32.mrb[0].mxu0
        %v1405 = vadd.f32 %v827, %v1404
        %v1406 = vpop.f32.mrb[0].mxu0
        %1407 = vmatprep.mubr.f32.mxu0 0.0
        %1408 = vmatmul.mubr.f32.gmra.mrb[0].mxu0 %v1126
        %v1409 = vpop.f32.mrb[0].mxu0
        %v1410 = vadd.f32 %v832, %v1409
        %v1411 = vpop.f32.mrb[0].mxu0
        %1412 = vmatprep.mubr.f32.mxu0 0.0
        %1413 = vmatmul.mubr.f32.gmra.mrb[0].mxu0 %v1129
        %v1414 = vpop.f32.mrb[0].mxu0
        %v1415 = vadd.f32 %v837, %v1414
        %v1416 = vpop.f32.mrb[0].mxu0
        %1417 = vmatprep.mubr.f32.mxu0 0.0
        %1418 = vmatmul.mubr.f32.gmra.mrb[0].mxu0 %v1132
        %v1419 = vpop.f32.mrb[0].mxu0
        %v1420 = vadd.f32 %v842, %v1419
        %v1421 = vpop.f32.mrb[0].mxu0
        %1422 = vmatprep.mubr.f32.mxu0 0.0
        %1423 = vmatmul.mubr.f32.gmra.mrb[0].mxu0 %v1135
        %v1424 = vpop.f32.mrb[0].mxu0
        %v1425 = vadd.f32 %v847, %v1424
        %v1426 = vpop.f32.mrb[0].mxu0
        %1427 = vmatprep.mubr.f32.mxu0 0.0
        %1428 = vmatmul.mubr.f32.gmra.mrb[0].mxu0 %v1138
        %v1429 = vpop.f32.mrb[0].mxu0
        %v1430 = vadd.f32 %v852, %v1429
        %v1431 = vpop.f32.mrb[0].mxu0
        %1432 = vmatprep.mubr.f32.mxu0 0.0
        %1433 = vmatmul.mubr.f32.gmra.mrb[0].mxu0 %v1141
        %v1434 = vpop.f32.mrb[0].mxu0
        %v1435 = vadd.f32 %v857, %v1434
        %v1436 = vpop.f32.mrb[0].mxu0
        %1437 = vmatprep.mubr.f32.mxu0 0.0
        %1438 = vmatmul.mubr.f32.gmra.mrb[0].mxu0 %v1144
        %v1439 = vpop.f32.mrb[0].mxu0
        %v1440 = vadd.f32 %v862, %v1439
        %v1441 = vpop.f32.mrb[0].mxu0
        %1442 = vmatprep.mubr.f32.mxu0 0.0
        %1443 = vmatmul.mubr.f32.gmra.mrb[0].mxu0 %v1147
        %v1444 = vpop.f32.mrb[0].mxu0
        %v1445 = vadd.f32 %v867, %v1444
        %v1446 = vpop.f32.mrb[0].mxu0
        %1447 = vmatprep.mubr.f32.mxu0 0.0
        %1448 = vmatmul.mubr.f32.gmra.mrb[0].mxu0 %v1150
        %v1449 = vpop.f32.mrb[0].mxu0
        %v1450 = vadd.f32 %v872, %v1449
        %v1451 = vpop.f32.mrb[0].mxu0
        %1452 = vmatprep.mubr.f32.mxu0 0.0
        %1453 = vmatmul.mubr.f32.gmra.mrb[0].mxu0 %v1153
        %v1454 = vpop.f32.mrb[0].mxu0
        %v1455 = vadd.f32 %v877, %v1454
        %v1456 = vpop.f32.mrb[0].mxu0
        %1457 = vmatprep.mubr.f32.mxu0 0.0
        %1458 = vmatmul.mubr.f32.gmra.mrb[0].mxu0 %v1156
        %v1459 = vpop.f32.mrb[0].mxu0
        %v1460 = vadd.f32 %v882, %v1459
        %v1461 = vpop.f32.mrb[0].mxu0
        %1462 = vmatprep.mubr.f32.mxu0 0.0
        %1463 = vmatmul.mubr.f32.gmra.mrb[0].mxu0 %v1159
        %v1464 = vpop.f32.mrb[0].mxu0
        %v1465 = vadd.f32 %v887, %v1464
        %v1466 = vpop.f32.mrb[0].mxu0
        %1467 = vmatprep.mubr.f32.mxu0 0.0
        %1468 = vmatmul.mubr.f32.gmra.mrb[0].mxu0 %v1162
        %v1469 = vpop.f32.mrb[0].mxu0
        %v1470 = vadd.f32 %v892, %v1469
        %v1471 = vpop.f32.mrb[0].mxu0
        %1472 = vmatprep.mubr.f32.mxu0 0.0
        %1473 = vmatmul.mubr.f32.gmra.mrb[0].mxu0 %v1165
        %v1474 = vpop.f32.mrb[0].mxu0
        %v1475 = vadd.f32 %v897, %v1474
        %v1476 = vpop.f32.mrb[0].mxu0
        %1477 = vmatprep.mubr.f32.mxu0 0.0
        %1478 = vmatmul.mubr.f32.gmra.mrb[0].mxu0 %v1168
        %v1479 = vpop.f32.mrb[0].mxu0
        %v1480 = vadd.f32 %v902, %v1479
        %v1481 = vpop.f32.mrb[0].mxu0
        %1482 = vmatprep.mubr.f32.mxu0 0.0
        %1483 = vmatmul.mubr.f32.gmra.mrb[0].mxu0 %v1171
        %v1484 = vpop.f32.mrb[0].mxu0
        %v1485 = vadd.f32 %v907, %v1484
        %v1486 = vpop.f32.mrb[0].mxu0
        %1487 = vmatprep.mubr.f32.mxu0 0.0
        %1488 = vmatmul.mubr.f32.gmra.mrb[0].mxu0 %v1174
        %v1489 = vpop.f32.mrb[0].mxu0
        %v1490 = vadd.f32 %v912, %v1489
        %v1491 = vpop.f32.mrb[0].mxu0
        %1492 = vmatprep.mubr.f32.mxu0 0.0
        %1493 = vmatmul.mubr.f32.gmra.mrb[0].mxu0 %v1177
        %v1494 = vpop.f32.mrb[0].mxu0
        %v1495 = vadd.f32 %v917, %v1494
        %v1496 = vpop.f32.mrb[0].mxu0
        %1497 = vmatprep.mubr.f32.mxu0 0.0
        %1498 = vmatmul.mubr.f32.gmra.mrb[0].mxu0 %v1180
        %v1499 = vpop.f32.mrb[0].mxu0
        %v1500 = vadd.f32 %v922, %v1499
        %v1501 = vpop.f32.mrb[0].mxu0
        %1502 = vmatprep.mubr.f32.mxu0 0.0
        %1503 = vmatmul.mubr.f32.gmra.mrb[0].mxu0 %v1183
        %v1504 = vpop.f32.mrb[0].mxu0
        %v1505 = vadd.f32 %v927, %v1504
        %v1506 = vpop.f32.mrb[0].mxu0
        %1507 = vmatprep.mubr.f32.mxu0 0.0
        %1508 = vmatmul.mubr.f32.gmra.mrb[0].mxu0 %v1186
        %v1509 = vpop.f32.mrb[0].mxu0
        %v1510 = vadd.f32 %v932, %v1509
        %v1511 = vpop.f32.mrb[0].mxu0
        %1512 = vmatprep.mubr.f32.mxu0 0.0
        %1513 = vmatmul.mubr.f32.gmra.mrb[0].mxu0 %v1189
        %v1514 = vpop.f32.mrb[0].mxu0
        %v1515 = vadd.f32 %v937, %v1514
        %v1516 = vpop.f32.mrb[0].mxu0
        %1517 = vmatprep.mubr.f32.mxu0 0.0
        %1518 = vmatmul.mubr.f32.gmra.mrb[0].mxu0 %v1192
        %v1519 = vpop.f32.mrb[0].mxu0
        %v1520 = vadd.f32 %v942, %v1519
        %v1521 = vpop.f32.mrb[0].mxu0
        %1522 = vmatprep.mubr.f32.mxu0 0.0
        %1523 = vmatmul.mubr.f32.gmra.mrb[0].mxu0 %v1195
        %v1524 = vpop.f32.mrb[0].mxu0
        %v1525 = vadd.f32 %v947, %v1524
        %v1526 = vpop.f32.mrb[0].mxu0
        %1527 = vmatprep.mubr.f32.mxu0 0.0
        %1528 = vmatmul.mubr.f32.gmra.mrb[0].mxu0 %v1198
        %v1529 = vpop.f32.mrb[0].mxu0
        %v1530 = vadd.f32 %v952, %v1529
        %v1531 = vpop.f32.mrb[0].mxu0
        %1532 = vmatprep.mubr.f32.mxu0 0.0
        %1533 = vmatmul.mubr.f32.gmra.mrb[0].mxu0 %v1201
        %v1534 = vpop.f32.mrb[0].mxu0
        %v1535 = vadd.f32 %v957, %v1534
        %v1536 = vpop.f32.mrb[0].mxu0
        %1537 = vmatprep.mubr.f32.mxu0 0.0
        %1538 = vmatmul.mubr.f32.gmra.mrb[0].mxu0 %v1204
        %v1539 = vpop.f32.mrb[0].mxu0
        %v1540 = vadd.f32 %v962, %v1539
        %v1541 = vpop.f32.mrb[0].mxu0
        %1542 = vmatprep.mubr.f32.mxu0 0.0
        %1543 = vmatmul.mubr.f32.gmra.mrb[0].mxu0 %v1207
        %v1544 = vpop.f32.mrb[0].mxu0
        %v1545 = vadd.f32 %v967, %v1544
        %v1546 = vpop.f32.mrb[0].mxu0
        %1547 = vmatprep.mubr.f32.mxu0 0.0
        %1548 = vmatmul.mubr.f32.gmra.mrb[0].mxu0 %v1210
        %v1549 = vpop.f32.mrb[0].mxu0
        %v1550 = vadd.f32 %v972, %v1549
        %v1551 = vpop.f32.mrb[0].mxu0
        %1552 = vmatprep.mubr.f32.mxu0 0.0
        %1553 = vmatmul.mubr.f32.gmra.mrb[0].mxu0 %v1213
        %v1554 = vpop.f32.mrb[0].mxu0
        %v1555 = vadd.f32 %v977, %v1554
        %v1556 = vpop.f32.mrb[0].mxu0
        %1557 = vmatprep.mubr.f32.mxu0 0.0
        %1558 = vmatmul.mubr.f32.gmra.mrb[0].mxu0 %v1216
        %v1559 = vpop.f32.mrb[0].mxu0
        %v1560 = vadd.f32 %v982, %v1559
        %v1561 = vpop.f32.mrb[0].mxu0
        %1562 = vmatprep.mubr.f32.mxu0 0.0
        %1563 = vmatmul.mubr.f32.gmra.mrb[0].mxu0 %v1219
        %v1564 = vpop.f32.mrb[0].mxu0
        %v1565 = vadd.f32 %v987, %v1564
        %v1566 = vpop.f32.mrb[0].mxu0
        %1567 = vmatprep.mubr.f32.mxu0 0.0
        %1568 = vmatmul.mubr.f32.gmra.mrb[0].mxu0 %v1222
        %v1569 = vpop.f32.mrb[0].mxu0
        %v1570 = vadd.f32 %v992, %v1569
        %v1571 = vpop.f32.mrb[0].mxu0
        %1572 = vmatprep.mubr.f32.mxu0 0.0
        %1573 = vmatmul.mubr.f32.gmra.mrb[0].mxu0 %v1225
        %v1574 = vpop.f32.mrb[0].mxu0
        %v1575 = vadd.f32 %v997, %v1574
        %v1576 = vpop.f32.mrb[0].mxu0
        %1577 = vmatprep.mubr.f32.mxu0 0.0
        %1578 = vmatmul.mubr.f32.gmra.mrb[0].mxu0 %v1228
        %v1579 = vpop.f32.mrb[0].mxu0
        %v1580 = vadd.f32 %v1002, %v1579
        %v1581 = vpop.f32.mrb[0].mxu0
        %1582 = vmatprep.mubr.f32.mxu0 0.0
        %1583 = vmatmul.mubr.f32.gmra.mrb[0].mxu0 %v1231
        %v1584 = vpop.f32.mrb[0].mxu0
        %v1585 = vadd.f32 %v1007, %v1584
        %v1586 = vpop.f32.mrb[0].mxu0
        %1587 = vmatprep.mubr.f32.mxu0 0.0
        %1588 = vmatmul.mubr.f32.gmra.mrb[0].mxu0 %v1234
        %v1589 = vpop.f32.mrb[0].mxu0
        %v1590 = vadd.f32 %v1012, %v1589
        %v1591 = vpop.f32.mrb[0].mxu0
        %1592 = vmatprep.mubr.f32.mxu0 0.0
        %1593 = vmatmul.mubr.f32.gmra.mrb[0].mxu0 %v1237
        %v1594 = vpop.f32.mrb[0].mxu0
        %v1595 = vadd.f32 %v1017, %v1594
        %v1596 = vpop.f32.mrb[0].mxu0
        %1597 = vmatprep.mubr.f32.mxu0 0.0
        %1598 = vmatmul.mubr.f32.gmra.mrb[0].mxu0 %v1240
        %v1599 = vpop.f32.mrb[0].mxu0
        %v1600 = vadd.f32 %v1022, %v1599
        %v1601 = vpop.f32.mrb[0].mxu0
        %1602 = vmatprep.mubr.f32.mxu0 0.0
        %1603 = vmatmul.mubr.f32.gmra.mrb[0].mxu0 %v1243
        %v1604 = vpop.f32.mrb[0].mxu0
        %v1605 = vadd.f32 %v1027, %v1604
        %v1606 = vpop.f32.mrb[0].mxu0
        %1607 = vmatprep.mubr.f32.mxu0 0.0
        %1608 = vmatmul.mubr.f32.gmra.mrb[0].mxu0 %v1246
        %v1609 = vpop.f32.mrb[0].mxu0
        %v1610 = vadd.f32 %v1032, %v1609
        %v1611 = vpop.f32.mrb[0].mxu0
        %1612 = vmatprep.mubr.f32.mxu0 0.0
        %1613 = vmatmul.mubr.f32.gmra.mrb[0].mxu0 %v1249
        %v1614 = vpop.f32.mrb[0].mxu0
        %v1615 = vadd.f32 %v1037, %v1614
        %v1616 = vpop.f32.mrb[0].mxu0
        %1617 = vmatprep.mubr.f32.mxu0 0.0
        %1618 = vmatmul.mubr.f32.gmra.mrb[0].mxu0 %v1252
        %v1619 = vpop.f32.mrb[0].mxu0
        %v1620 = vadd.f32 %v1042, %v1619
        %v1621 = vpop.f32.mrb[0].mxu0
        %1622 = vmatprep.mubr.f32.mxu0 0.0
        %1623 = vmatmul.mubr.f32.gmra.mrb[0].mxu0 %v1255
        %v1624 = vpop.f32.mrb[0].mxu0
        %v1625 = vadd.f32 %v1047, %v1624
        %v1626 = vpop.f32.mrb[0].mxu0
        %1627 = vmatprep.mubr.f32.mxu0 0.0
        %1628 = vmatmul.mubr.f32.gmra.mrb[0].mxu0 %v1258
        %v1629 = vpop.f32.mrb[0].mxu0
        %v1630 = vadd.f32 %v1052, %v1629
        %v1631 = vpop.f32.mrb[0].mxu0
        %1632 = vmatprep.mubr.f32.mxu0 0.0
        %1633 = vmatmul.mubr.f32.gmra.mrb[0].mxu0 %v1261
        %v1634 = vpop.f32.mrb[0].mxu0
        %v1635 = vadd.f32 %v1057, %v1634
        %v1636 = vpop.f32.mrb[0].mxu0
        %1637 = vmatprep.mubr.f32.mxu0 0.0
        %1638 = vmatmul.mubr.f32.gmra.mrb[0].mxu0 %v1264
        %v1639 = vpop.f32.mrb[0].mxu0
        %v1640 = vadd.f32 %v1062, %v1639
        %v1641 = vpop.f32.mrb[0].mxu0
        %1642 = vmatprep.mubr.f32.mxu0 0.0
        %1643 = vmatmul.mubr.f32.gmra.mrb[0].mxu0 %v1267
        %v1644 = vpop.f32.mrb[0].mxu0
        %v1645 = vadd.f32 %v1067, %v1644
        %v1646 = vpop.f32.mrb[0].mxu0
        %1647 = vmatprep.mubr.f32.mxu0 0.0
        %1648 = vmatmul.mubr.f32.gmra.mrb[0].mxu0 %v1270
        %v1649 = vpop.f32.mrb[0].mxu0
        %v1650 = vadd.f32 %v1072, %v1649
        %v1651 = vpop.f32.mrb[0].mxu0
        %1652 = vmatprep.mubr.f32.mxu0 0.0
        %1653 = vmatmul.mubr.f32.gmra.mrb[0].mxu0 %v1273
        %v1654 = vpop.f32.mrb[0].mxu0
        %v1655 = vadd.f32 %v1077, %v1654
        %v1656 = vpop.f32.mrb[0].mxu0
        %1657 = vmatprep.mubr.f32.mxu0 0.0
        %1658 = vmatmul.mubr.f32.gmra.mrb[0].mxu0 %v1276
        %v1659 = vpop.f32.mrb[0].mxu0
        %v1660 = vadd.f32 %v1082, %v1659
        %v1661 = vpop.f32.mrb[0].mxu0
        %1662 = vdwg.mxu0
        %v1663 = vld [vmem:[%s364] sm:$0x1]
        %v1665 = vlaneseq
        %v1666 = vshrl.u32 %v1665, 7
        %v1667 = vsub.s32 0, %v1666
        %v1668 = vrot.slane %v1663, %v1667
        %v1670 = vadd.f32 %v1345, %v1668
        %v1671 = vadd.f32 %v1350, %v1668
        %v1672 = vadd.f32 %v1355, %v1668
        %v1673 = vadd.f32 %v1360, %v1668
        %v1674 = vadd.f32 %v1365, %v1668
        %v1675 = vadd.f32 %v1370, %v1668
        %v1676 = vadd.f32 %v1375, %v1668
        %v1677 = vadd.f32 %v1380, %v1668
        %v1678 = vadd.f32 %v1385, %v1668
        %v1679 = vadd.f32 %v1390, %v1668
        %v1680 = vadd.f32 %v1395, %v1668
        %v1681 = vadd.f32 %v1400, %v1668
        %v1682 = vadd.f32 %v1405, %v1668
        %v1683 = vadd.f32 %v1410, %v1668
        %v1684 = vadd.f32 %v1415, %v1668
        %v1685 = vadd.f32 %v1420, %v1668
        %v1686 = vadd.f32 %v1425, %v1668
        %v1687 = vadd.f32 %v1430, %v1668
        %v1688 = vadd.f32 %v1435, %v1668
        %v1689 = vadd.f32 %v1440, %v1668
        %v1690 = vadd.f32 %v1445, %v1668
        %v1691 = vadd.f32 %v1450, %v1668
        %v1692 = vadd.f32 %v1455, %v1668
        %v1693 = vadd.f32 %v1460, %v1668
        %v1694 = vadd.f32 %v1465, %v1668
        %v1695 = vadd.f32 %v1470, %v1668
        %v1696 = vadd.f32 %v1475, %v1668
        %v1697 = vadd.f32 %v1480, %v1668
        %v1698 = vadd.f32 %v1485, %v1668
        %v1699 = vadd.f32 %v1490, %v1668
        %v1700 = vadd.f32 %v1495, %v1668
        %v1701 = vadd.f32 %v1500, %v1668
        %v1702 = vadd.f32 %v1505, %v1668
        %v1703 = vadd.f32 %v1510, %v1668
        %v1704 = vadd.f32 %v1515, %v1668
        %v1705 = vadd.f32 %v1520, %v1668
        %v1706 = vadd.f32 %v1525, %v1668
        %v1707 = vadd.f32 %v1530, %v1668
        %v1708 = vadd.f32 %v1535, %v1668
        %v1709 = vadd.f32 %v1540, %v1668
        %v1710 = vadd.f32 %v1545, %v1668
        %v1711 = vadd.f32 %v1550, %v1668
        %v1712 = vadd.f32 %v1555, %v1668
        %v1713 = vadd.f32 %v1560, %v1668
        %v1714 = vadd.f32 %v1565, %v1668
        %v1715 = vadd.f32 %v1570, %v1668
        %v1716 = vadd.f32 %v1575, %v1668
        %v1717 = vadd.f32 %v1580, %v1668
        %v1718 = vadd.f32 %v1585, %v1668
        %v1719 = vadd.f32 %v1590, %v1668
        %v1720 = vadd.f32 %v1595, %v1668
        %v1721 = vadd.f32 %v1600, %v1668
        %v1722 = vadd.f32 %v1605, %v1668
        %v1723 = vadd.f32 %v1610, %v1668
        %v1724 = vadd.f32 %v1615, %v1668
        %v1725 = vadd.f32 %v1620, %v1668
        %v1726 = vadd.f32 %v1625, %v1668
        %v1727 = vadd.f32 %v1630, %v1668
        %v1728 = vadd.f32 %v1635, %v1668
        %v1729 = vadd.f32 %v1640, %v1668
        %v1730 = vadd.f32 %v1645, %v1668
        %v1731 = vadd.f32 %v1650, %v1668
        %v1732 = vadd.f32 %v1655, %v1668
        %v1733 = vadd.f32 %v1660, %v1668
        %v1734 = vtanh.pop %v1670
        %v1735 = vtanh.pop %v1671
        %v1736 = vtanh.pop %v1672
        %v1737 = vtanh.pop %v1673
        %v1738 = vtanh.pop %v1674
        %v1739 = vtanh.pop %v1675
        %v1740 = vtanh.pop %v1676
        %v1741 = vtanh.pop %v1677
        %v1742 = vtanh.pop %v1678
        %v1743 = vtanh.pop %v1679
        %v1744 = vtanh.pop %v1680
        %v1745 = vtanh.pop %v1681
        %v1746 = vtanh.pop %v1682
        %v1747 = vtanh.pop %v1683
        %v1748 = vtanh.pop %v1684
        %v1749 = vtanh.pop %v1685
        %v1750 = vtanh.pop %v1686
        %v1751 = vtanh.pop %v1687
        %v1752 = vtanh.pop %v1688
        %v1753 = vtanh.pop %v1689
        %v1754 = vtanh.pop %v1690
        %v1755 = vtanh.pop %v1691
        %v1756 = vtanh.pop %v1692
        %v1757 = vtanh.pop %v1693
        %v1758 = vtanh.pop %v1694
        %v1759 = vtanh.pop %v1695
        %v1760 = vtanh.pop %v1696
        %v1761 = vtanh.pop %v1697
        %v1762 = vtanh.pop %v1698
        %v1763 = vtanh.pop %v1699
        %v1764 = vtanh.pop %v1700
        %v1765 = vtanh.pop %v1701
        %v1766 = vtanh.pop %v1702
        %v1767 = vtanh.pop %v1703
        %v1768 = vtanh.pop %v1704
        %v1769 = vtanh.pop %v1705
        %v1770 = vtanh.pop %v1706
        %v1771 = vtanh.pop %v1707
        %v1772 = vtanh.pop %v1708
        %v1773 = vtanh.pop %v1709
        %v1774 = vtanh.pop %v1710
        %v1775 = vtanh.pop %v1711
        %v1776 = vtanh.pop %v1712
        %v1777 = vtanh.pop %v1713
        %v1778 = vtanh.pop %v1714
        %v1779 = vtanh.pop %v1715
        %v1780 = vtanh.pop %v1716
        %v1781 = vtanh.pop %v1717
        %v1782 = vtanh.pop %v1718
        %v1783 = vtanh.pop %v1719
        %v1784 = vtanh.pop %v1720
        %v1785 = vtanh.pop %v1721
        %v1786 = vtanh.pop %v1722
        %v1787 = vtanh.pop %v1723
        %v1788 = vtanh.pop %v1724
        %v1789 = vtanh.pop %v1725
        %v1790 = vtanh.pop %v1726
        %v1791 = vtanh.pop %v1727
        %v1792 = vtanh.pop %v1728
        %v1793 = vtanh.pop %v1729
        %v1794 = vtanh.pop %v1730
        %v1795 = vtanh.pop %v1731
        %v1796 = vtanh.pop %v1732
        %v1797 = vtanh.pop %v1733
        %v1798 = vld [vmem:[%s6] sm:$0x1]
        %v1800 = vsel %vm1085, %v1798, 0
        %v1803 = vsel %vm1085, %v1734, 0
        %v1806 = vsel %vm1085, %v1735, 0
        %v1809 = vsel %vm1085, %v1736, 0
        %v1812 = vsel %vm1085, %v1737, 0
        %v1815 = vsel %vm1085, %v1738, 0
        %v1818 = vsel %vm1085, %v1739, 0
        %v1821 = vsel %vm1085, %v1740, 0
        %v1824 = vsel %vm1085, %v1741, 0
        %v1827 = vsel %vm1085, %v1742, 0
        %v1830 = vsel %vm1085, %v1743, 0
        %v1833 = vsel %vm1085, %v1744, 0
        %v1836 = vsel %vm1085, %v1745, 0
        %v1839 = vsel %vm1085, %v1746, 0
        %v1842 = vsel %vm1085, %v1747, 0
        %v1845 = vsel %vm1085, %v1748, 0
        %v1848 = vsel %vm1085, %v1749, 0
        %v1851 = vsel %vm1085, %v1750, 0
        %v1854 = vsel %vm1085, %v1751, 0
        %v1857 = vsel %vm1085, %v1752, 0
        %v1860 = vsel %vm1085, %v1753, 0
        %v1863 = vsel %vm1085, %v1754, 0
        %v1866 = vsel %vm1085, %v1755, 0
        %v1869 = vsel %vm1085, %v1756, 0
        %v1872 = vsel %vm1085, %v1757, 0
        %v1875 = vsel %vm1085, %v1758, 0
        %v1878 = vsel %vm1085, %v1759, 0
        %v1881 = vsel %vm1085, %v1760, 0
        %v1884 = vsel %vm1085, %v1761, 0
        %v1887 = vsel %vm1085, %v1762, 0
        %v1890 = vsel %vm1085, %v1763, 0
        %v1893 = vsel %vm1085, %v1764, 0
        %v1896 = vsel %vm1085, %v1765, 0
        %v1899 = vsel %vm1085, %v1766, 0
        %v1902 = vsel %vm1085, %v1767, 0
        %v1905 = vsel %vm1085, %v1768, 0
        %v1908 = vsel %vm1085, %v1769, 0
        %v1911 = vsel %vm1085, %v1770, 0
        %v1914 = vsel %vm1085, %v1771, 0
        %v1917 = vsel %vm1085, %v1772, 0
        %v1920 = vsel %vm1085, %v1773, 0
        %v1923 = vsel %vm1085, %v1774, 0
        %v1926 = vsel %vm1085, %v1775, 0
        %v1929 = vsel %vm1085, %v1776, 0
        %v1932 = vsel %vm1085, %v1777, 0
        %v1935 = vsel %vm1085, %v1778, 0
        %v1938 = vsel %vm1085, %v1779, 0
        %v1941 = vsel %vm1085, %v1780, 0
        %v1944 = vsel %vm1085, %v1781, 0
        %v1947 = vsel %vm1085, %v1782, 0
        %v1950 = vsel %vm1085, %v1783, 0
        %v1953 = vsel %vm1085, %v1784, 0
        %v1956 = vsel %vm1085, %v1785, 0
        %v1959 = vsel %vm1085, %v1786, 0
        %v1962 = vsel %vm1085, %v1787, 0
        %v1965 = vsel %vm1085, %v1788, 0
        %v1968 = vsel %vm1085, %v1789, 0
        %v1971 = vsel %vm1085, %v1790, 0
        %v1974 = vsel %vm1085, %v1791, 0
        %v1977 = vsel %vm1085, %v1792, 0
        %v1980 = vsel %vm1085, %v1793, 0
        %v1983 = vsel %vm1085, %v1794, 0
        %v1986 = vsel %vm1085, %v1795, 0
        %v1989 = vsel %vm1085, %v1796, 0
        %v1992 = vsel %vm1085, %v1797, 0
        %1994 = vmatprep.subr.mxu0 0.0
        %1995 = vmatpush1.xpose.msra.mxu0 %v1803
        %1996 = vmatprep.subr.mxu0 0.0
        %1997 = vmatpush1.xpose.msra.mxu0 %v1806
        %1998 = vmatprep.subr.mxu0 0.0
        %1999 = vmatpush1.xpose.msra.mxu0 %v1809
        %2000 = vmatprep.subr.mxu0 0.0
        %2001 = vmatpush1.xpose.msra.mxu0 %v1812
        %2002 = vmatprep.subr.mxu0 0.0
        %2003 = vmatpush1.xpose.msra.mxu0 %v1815
        %2004 = vmatprep.subr.mxu0 0.0
        %2005 = vmatpush1.xpose.msra.mxu0 %v1818
        %2006 = vmatprep.subr.mxu0 0.0
        %2007 = vmatpush1.xpose.msra.mxu0 %v1821
        %2008 = vmatprep.subr.mxu0 0.0
        %2009 = vmatpush1.xpose.msra.mxu0 %v1824
        %2010 = vmatprep.subr.mxu0 0.0
        %2011 = vmatpush1.xpose.msra.mxu0 %v1827
        %2012 = vmatprep.subr.mxu0 0.0
        %2013 = vmatpush1.xpose.msra.mxu0 %v1830
        %2014 = vmatprep.subr.mxu0 0.0
        %2015 = vmatpush1.xpose.msra.mxu0 %v1833
        %2016 = vmatprep.subr.mxu0 0.0
        %2017 = vmatpush1.xpose.msra.mxu0 %v1836
        %2018 = vmatprep.subr.mxu0 0.0
        %2019 = vmatpush1.xpose.msra.mxu0 %v1839
        %2020 = vmatprep.subr.mxu0 0.0
        %2021 = vmatpush1.xpose.msra.mxu0 %v1842
        %2022 = vmatprep.subr.mxu0 0.0
        %2023 = vmatpush1.xpose.msra.mxu0 %v1845
        %2024 = vmatprep.subr.mxu0 0.0
        %2025 = vmatpush1.xpose.msra.mxu0 %v1848
        %2026 = vmatprep.subr.mxu0 0.0
        %2027 = vmatpush1.xpose.msra.mxu0 %v1851
        %2028 = vmatprep.subr.mxu0 0.0
        %2029 = vmatpush1.xpose.msra.mxu0 %v1854
        %2030 = vmatprep.subr.mxu0 0.0
        %2031 = vmatpush1.xpose.msra.mxu0 %v1857
        %2032 = vmatprep.subr.mxu0 0.0
        %2033 = vmatpush1.xpose.msra.mxu0 %v1860
        %2034 = vmatprep.subr.mxu0 0.0
        %2035 = vmatpush1.xpose.msra.mxu0 %v1863
        %2036 = vmatprep.subr.mxu0 0.0
        %2037 = vmatpush1.xpose.msra.mxu0 %v1866
        %2038 = vmatprep.subr.mxu0 0.0
        %2039 = vmatpush1.xpose.msra.mxu0 %v1869
        %2040 = vmatprep.subr.mxu0 0.0
        %2041 = vmatpush1.xpose.msra.mxu0 %v1872
        %2042 = vmatprep.subr.mxu0 0.0
        %2043 = vmatpush1.xpose.msra.mxu0 %v1875
        %2044 = vmatprep.subr.mxu0 0.0
        %2045 = vmatpush1.xpose.msra.mxu0 %v1878
        %2046 = vmatprep.subr.mxu0 0.0
        %2047 = vmatpush1.xpose.msra.mxu0 %v1881
        %2048 = vmatprep.subr.mxu0 0.0
        %2049 = vmatpush1.xpose.msra.mxu0 %v1884
        %2050 = vmatprep.subr.mxu0 0.0
        %2051 = vmatpush1.xpose.msra.mxu0 %v1887
        %2052 = vmatprep.subr.mxu0 0.0
        %2053 = vmatpush1.xpose.msra.mxu0 %v1890
        %2054 = vmatprep.subr.mxu0 0.0
        %2055 = vmatpush1.xpose.msra.mxu0 %v1893
        %2056 = vmatprep.subr.mxu0 0.0
        %2057 = vmatpush1.xpose.msra.mxu0 %v1896
        %2058 = vmatprep.mubr.f32.mxu0 0.0
        %2059 = vmatmul.mubr.f32.gmra.mrb[0].mxu0 %v1800
        %v2060 = vpop.f32.mrb[0].mxu0
        %v2061 = vadd.f32 0.0, %v2060
        %v2062 = vpop.f32.mrb[0].mxu0
        %v2063 = vadd.f32 0.0, %v2062
        %2064 = vdwg.mxu0
        %2065 = vmatprep.subr.mxu0 0.0
        %2066 = vmatpush1.xpose.msra.mxu0 %v1899
        %2067 = vmatprep.subr.mxu0 0.0
        %2068 = vmatpush1.xpose.msra.mxu0 %v1902
        %2069 = vmatprep.subr.mxu0 0.0
        %2070 = vmatpush1.xpose.msra.mxu0 %v1905
        %2071 = vmatprep.subr.mxu0 0.0
        %2072 = vmatpush1.xpose.msra.mxu0 %v1908
        %2073 = vmatprep.subr.mxu0 0.0
        %2074 = vmatpush1.xpose.msra.mxu0 %v1911
        %2075 = vmatprep.subr.mxu0 0.0
        %2076 = vmatpush1.xpose.msra.mxu0 %v1914
        %2077 = vmatprep.subr.mxu0 0.0
        %2078 = vmatpush1.xpose.msra.mxu0 %v1917
        %2079 = vmatprep.subr.mxu0 0.0
        %2080 = vmatpush1.xpose.msra.mxu0 %v1920
        %2081 = vmatprep.subr.mxu0 0.0
        %2082 = vmatpush1.xpose.msra.mxu0 %v1923
        %2083 = vmatprep.subr.mxu0 0.0
        %2084 = vmatpush1.xpose.msra.mxu0 %v1926
        %2085 = vmatprep.subr.mxu0 0.0
        %2086 = vmatpush1.xpose.msra.mxu0 %v1929
        %2087 = vmatprep.subr.mxu0 0.0
        %2088 = vmatpush1.xpose.msra.mxu0 %v1932
        %2089 = vmatprep.subr.mxu0 0.0
        %2090 = vmatpush1.xpose.msra.mxu0 %v1935
        %2091 = vmatprep.subr.mxu0 0.0
        %2092 = vmatpush1.xpose.msra.mxu0 %v1938
        %2093 = vmatprep.subr.mxu0 0.0
        %2094 = vmatpush1.xpose.msra.mxu0 %v1941
        %2095 = vmatprep.subr.mxu0 0.0
        %2096 = vmatpush1.xpose.msra.mxu0 %v1944
        %2097 = vmatprep.subr.mxu0 0.0
        %2098 = vmatpush1.xpose.msra.mxu0 %v1947
        %2099 = vmatprep.subr.mxu0 0.0
        %2100 = vmatpush1.xpose.msra.mxu0 %v1950
        %2101 = vmatprep.subr.mxu0 0.0
        %2102 = vmatpush1.xpose.msra.mxu0 %v1953
        %2103 = vmatprep.subr.mxu0 0.0
        %2104 = vmatpush1.xpose.msra.mxu0 %v1956
        %2105 = vmatprep.subr.mxu0 0.0
        %2106 = vmatpush1.xpose.msra.mxu0 %v1959
        %2107 = vmatprep.subr.mxu0 0.0
        %2108 = vmatpush1.xpose.msra.mxu0 %v1962
        %2109 = vmatprep.subr.mxu0 0.0
        %2110 = vmatpush1.xpose.msra.mxu0 %v1965
        %2111 = vmatprep.subr.mxu0 0.0
        %2112 = vmatpush1.xpose.msra.mxu0 %v1968
        %2113 = vmatprep.subr.mxu0 0.0
        %2114 = vmatpush1.xpose.msra.mxu0 %v1971
        %2115 = vmatprep.subr.mxu0 0.0
        %2116 = vmatpush1.xpose.msra.mxu0 %v1974
        %2117 = vmatprep.subr.mxu0 0.0
        %2118 = vmatpush1.xpose.msra.mxu0 %v1977
        %2119 = vmatprep.subr.mxu0 0.0
        %2120 = vmatpush1.xpose.msra.mxu0 %v1980
        %2121 = vmatprep.subr.mxu0 0.0
        %2122 = vmatpush1.xpose.msra.mxu0 %v1983
        %2123 = vmatprep.subr.mxu0 0.0
        %2124 = vmatpush1.xpose.msra.mxu0 %v1986
        %2125 = vmatprep.subr.mxu0 0.0
        %2126 = vmatpush1.xpose.msra.mxu0 %v1989
        %2127 = vmatprep.subr.mxu0 0.0
        %2128 = vmatpush1.xpose.msra.mxu0 %v1992
        %2129 = vmatprep.mubr.f32.mxu0 0.0
        %2130 = vmatmul.mubr.f32.gmra.mrb[0].mxu0 %v1800
        %v2131 = vpop.f32.mrb[0].mxu0
        %v2132 = vadd.f32 0.0, %v2131
        %v2133 = vpop.f32.mrb[0].mxu0
        %v2134 = vadd.f32 0.0, %v2133
        %2135 = vdwg.mxu0
        %vm2136 = vcmask 1040384
        %v2137 = vsel %vm2136, %v2061, -inf
        %v2138 = vsel %vm2136, %v2063, -inf
        %v2139 = vsel %vm2136, %v2132, -inf
        %v2140 = vsel %vm2136, %v2134, -inf
        %v2141 = vmax.f32 %v2137, %v2138
        %v2142 = vmax.f32 %v2139, %v2140
        %v2143 = vmax.f32 %v2141, %v2142
        %2144 = vmax.xlane.f32.xlu0 %v2143
        %v2145 = vpop.xlane.xlu0 %2144
        %v2146 = vsub.f32 %v2061, %v2145
        %v2147 = vsub.f32 %v2063, %v2145
        %v2148 = vsub.f32 %v2132, %v2145
        %v2149 = vsub.f32 %v2134, %v2145
        %v2150 = vmul.f32 %v2146, 1.442695
        %v2151 = vpow.pop %v2150
        %v2152 = vmul.f32 %v2147, 1.442695
        %v2153 = vpow.pop %v2152
        %v2154 = vmul.f32 %v2148, 1.442695
        %v2155 = vpow.pop %v2154
        %v2156 = vmul.f32 %v2149, 1.442695
        %v2157 = vpow.pop %v2156
        %v2158 = vld [vmem:[%s361] sm:$0xf]
        %v2160 = vlaneseq
        %v2161 = vshrl.u32 %v2160, 7
        %v2162 = vsub.s32 0, %v2161
        %v2163 = vrot.slane %v2158, %v2162
        %v2164 = vlaneseq
        %v2165 = vshrl.u32 %v2164, 7
        %v2166 = vsub.s32 1, %v2165
        %v2167 = vrot.slane %v2158, %v2166
        %v2168 = vlaneseq
        %v2169 = vshrl.u32 %v2168, 7
        %v2170 = vsub.s32 2, %v2169
        %v2171 = vrot.slane %v2158, %v2170
        %v2172 = vlaneseq
        %v2173 = vshrl.u32 %v2172, 7
        %v2174 = vsub.s32 3, %v2173
        %v2175 = vrot.slane %v2158, %v2174
        %v2180 = vmul.f32 %v2151, %v2163
        %v2181 = vmul.f32 %v2153, %v2167
        %v2182 = vmul.f32 %v2155, %v2171
        %v2183 = vmul.f32 %v2157, %v2175
        %v2184 = vsel %vm2136, %v2180, 0.0
        %v2185 = vsel %vm2136, %v2181, 0.0
        %v2186 = vadd.f32 %v2184, %v2185
        %v2187 = vsel %vm2136, %v2182, 0.0
        %v2188 = vadd.f32 %v2186, %v2187
        %v2189 = vsel %vm2136, %v2183, 0.0
        %v2190 = vadd.f32 %v2188, %v2189
        %2191 = vadd.xlane.f32.xlu0 %v2190
        %v2192 = vpop.xlane.xlu0 %2191
        %v2193 = vrcp.pop %v2192
        %v2194 = vmul.f32 %v2192, %v2193
        %v2195 = vsub.f32 2.0, %v2194
        %v2196 = vmul.f32 %v2193, %v2195
        %v2197 = vmul.f32 %v2180, %v2196
        %v2198 = vmul.f32 %v2181, %v2196
        %v2199 = vmul.f32 %v2182, %v2196
        %v2200 = vmul.f32 %v2183, %v2196
        %v2205 = vcombine.low %v2197, %v2198
        %v2206 = vcombine.low %v2199, %v2200
        %v2208 = vunpack.c.l.s4 1966171168
        %v2209 = vunpack.c.0.s8 %v2208
        %v2210 = vlaneseq
        %v2211 = vshrl.u32 %v2210, 7
        %v2212 = vsub.s32 %v2209, %v2211
        %v2213 = vrot.slane %v2205, %v2212
        %v2215 = vunpack.c.l.s4 1966171168
        %v2216 = vunpack.c.0.s8 %v2215
        %v2217 = vlaneseq
        %v2218 = vshrl.u32 %v2217, 7
        %v2219 = vsub.s32 %v2216, %v2218
        %v2220 = vrot.slane %v2206, %v2219
        %v2221 = vcombine.low %v2213, %v2220
        %v2223 = vunpack.c.l.s4 1966171168
        %v2224 = vunpack.c.0.s8 %v2223
        %v2225 = vlaneseq
        %v2226 = vshrl.u32 %v2225, 7
        %v2227 = vsub.s32 %v2224, %v2226
        %v2228 = vrot.slane %v2221, %v2227
        %v2230 = vlaneseq
        %vm2231 = vcmp.ge.s32.totalorder %v2230, 0
        %vm2232 = vcmp.lt.s32.totalorder %v2230, 512
        %vm2233 = vmand %vm2231, %vm2232
        %2234 = vst.msk [vmem:[%s347] sm:$0xf] %vm2233, %v2228
        %2235 = vmatprep.subr.mxu0 0.0
        %2236 = vmatpush1.msra.mxu0 %v365
        %2237 = vmatprep.subr.mxu0 0.0
        %2238 = vmatpush1.msra.mxu0 %v366
        %2239 = vmatprep.subr.mxu0 0.0
        %2240 = vmatpush1.msra.mxu0 %v367
        %2241 = vmatprep.subr.mxu0 0.0
        %2242 = vmatpush1.msra.mxu0 %v368
        %2243 = vmatprep.subr.mxu0 0.0
        %2244 = vmatpush1.msra.mxu0 %v369
        %2245 = vmatprep.subr.mxu0 0.0
        %2246 = vmatpush1.msra.mxu0 %v370
        %2247 = vmatprep.subr.mxu0 0.0
        %2248 = vmatpush1.msra.mxu0 %v371
        %2249 = vmatprep.subr.mxu0 0.0
        %2250 = vmatpush1.msra.mxu0 %v372
        %2251 = vmatprep.subr.mxu0 0.0
        %2252 = vmatpush1.msra.mxu0 %v373
        %2253 = vmatprep.subr.mxu0 0.0
        %2254 = vmatpush1.msra.mxu0 %v374
        %2255 = vmatprep.subr.mxu0 0.0
        %2256 = vmatpush1.msra.mxu0 %v375
        %2257 = vmatprep.subr.mxu0 0.0
        %2258 = vmatpush1.msra.mxu0 %v376
        %2259 = vmatprep.subr.mxu0 0.0
        %2260 = vmatpush1.msra.mxu0 %v377
        %2261 = vmatprep.subr.mxu0 0.0
        %2262 = vmatpush1.msra.mxu0 %v378
        %2263 = vmatprep.subr.mxu0 0.0
        %2264 = vmatpush1.msra.mxu0 %v379
        %2265 = vmatprep.subr.mxu0 0.0
        %2266 = vmatpush1.msra.mxu0 %v380
        %2267 = vmatprep.subr.mxu0 0.0
        %2268 = vmatpush1.msra.mxu0 %v381
        %2269 = vmatprep.subr.mxu0 0.0
        %2270 = vmatpush1.msra.mxu0 %v382
        %2271 = vmatprep.subr.mxu0 0.0
        %2272 = vmatpush1.msra.mxu0 %v383
        %2273 = vmatprep.subr.mxu0 0.0
        %2274 = vmatpush1.msra.mxu0 %v384
        %2275 = vmatprep.subr.mxu0 0.0
        %2276 = vmatpush1.msra.mxu0 %v385
        %2277 = vmatprep.subr.mxu0 0.0
        %2278 = vmatpush1.msra.mxu0 %v386
        %2279 = vmatprep.subr.mxu0 0.0
        %2280 = vmatpush1.msra.mxu0 %v387
        %2281 = vmatprep.subr.mxu0 0.0
        %2282 = vmatpush1.msra.mxu0 %v388
        %2283 = vmatprep.subr.mxu0 0.0
        %2284 = vmatpush1.msra.mxu0 %v389
        %2285 = vmatprep.subr.mxu0 0.0
        %2286 = vmatpush1.msra.mxu0 %v390
        %2287 = vmatprep.subr.mxu0 0.0
        %2288 = vmatpush1.msra.mxu0 %v391
        %2289 = vmatprep.subr.mxu0 0.0
        %2290 = vmatpush1.msra.mxu0 %v392
        %2291 = vmatprep.subr.mxu0 0.0
        %2292 = vmatpush1.msra.mxu0 %v393
        %2293 = vmatprep.subr.mxu0 0.0
        %2294 = vmatpush1.msra.mxu0 %v394
        %2295 = vmatprep.subr.mxu0 0.0
        %2296 = vmatpush1.msra.mxu0 %v395
        %2297 = vmatprep.subr.mxu0 0.0
        %2298 = vmatpush1.msra.mxu0 %v396
        %2299 = vmatprep.mubr.f32.mxu0 %v2181
        %2300 = vmatmul.mubr.f32.gmra.mrb[0].mxu0 %v2180
        %v2301 = vpop.f32.mrb[0].mxu0
        %v2302 = vadd.f32 0.0, %v2301
        %v2303 = vpop.f32.mrb[0].mxu0
        %2304 = vdwg.mxu0
        %2305 = vmatprep.subr.mxu0 0.0
        %2306 = vmatpush1.msra.mxu0 %v397
        %2307 = vmatprep.subr.mxu0 0.0
        %2308 = vmatpush1.msra.mxu0 %v398
        %2309 = vmatprep.subr.mxu0 0.0
        %2310 = vmatpush1.msra.mxu0 %v399
        %2311 = vmatprep.subr.mxu0 0.0
        %2312 = vmatpush1.msra.mxu0 %v400
        %2313 = vmatprep.subr.mxu0 0.0
        %2314 = vmatpush1.msra.mxu0 %v401
        %2315 = vmatprep.subr.mxu0 0.0
        %2316 = vmatpush1.msra.mxu0 %v402
        %2317 = vmatprep.subr.mxu0 0.0
        %2318 = vmatpush1.msra.mxu0 %v403
        %2319 = vmatprep.subr.mxu0 0.0
        %2320 = vmatpush1.msra.mxu0 %v404
        %2321 = vmatprep.subr.mxu0 0.0
        %2322 = vmatpush1.msra.mxu0 %v405
        %2323 = vmatprep.subr.mxu0 0.0
        %2324 = vmatpush1.msra.mxu0 %v406
        %2325 = vmatprep.subr.mxu0 0.0
        %2326 = vmatpush1.msra.mxu0 %v407
        %2327 = vmatprep.subr.mxu0 0.0
        %2328 = vmatpush1.msra.mxu0 %v408
        %2329 = vmatprep.subr.mxu0 0.0
        %2330 = vmatpush1.msra.mxu0 %v409
        %2331 = vmatprep.subr.mxu0 0.0
        %2332 = vmatpush1.msra.mxu0 %v410
        %2333 = vmatprep.subr.mxu0 0.0
        %2334 = vmatpush1.msra.mxu0 %v411
        %2335 = vmatprep.subr.mxu0 0.0
        %2336 = vmatpush1.msra.mxu0 %v412
        %2337 = vmatprep.subr.mxu0 0.0
        %2338 = vmatpush1.msra.mxu0 %v413
        %2339 = vmatprep.subr.mxu0 0.0
        %2340 = vmatpush1.msra.mxu0 %v414
        %2341 = vmatprep.subr.mxu0 0.0
        %2342 = vmatpush1.msra.mxu0 %v415
        %2343 = vmatprep.subr.mxu0 0.0
        %2344 = vmatpush1.msra.mxu0 %v416
        %2345 = vmatprep.subr.mxu0 0.0
        %2346 = vmatpush1.msra.mxu0 %v417
        %2347 = vmatprep.subr.mxu0 0.0
        %2348 = vmatpush1.msra.mxu0 %v418
        %2349 = vmatprep.subr.mxu0 0.0
        %2350 = vmatpush1.msra.mxu0 %v419
        %2351 = vmatprep.subr.mxu0 0.0
        %2352 = vmatpush1.msra.mxu0 %v420
        %2353 = vmatprep.subr.mxu0 0.0
        %2354 = vmatpush1.msra.mxu0 %v421
        %2355 = vmatprep.subr.mxu0 0.0
        %2356 = vmatpush1.msra.mxu0 %v422
        %2357 = vmatprep.subr.mxu0 0.0
        %2358 = vmatpush1.msra.mxu0 %v423
        %2359 = vmatprep.subr.mxu0 0.0
        %2360 = vmatpush1.msra.mxu0 %v424
        %2361 = vmatprep.subr.mxu0 0.0
        %2362 = vmatpush1.msra.mxu0 %v425
        %2363 = vmatprep.subr.mxu0 0.0
        %2364 = vmatpush1.msra.mxu0 %v426
        %2365 = vmatprep.subr.mxu0 0.0
        %2366 = vmatpush1.msra.mxu0 %v427
        %2367 = vmatprep.subr.mxu0 0.0
        %2368 = vmatpush1.msra.mxu0 %v428
        %2369 = vmatprep.mubr.f32.mxu0 %v2183
        %2370 = vmatmul.mubr.f32.gmra.mrb[0].mxu0 %v2182
        %v2371 = vpop.f32.mrb[0].mxu0
        %v2372 = vadd.f32 %v2302, %v2371
        %v2373 = vpop.f32.mrb[0].mxu0
        %2374 = vdwg.mxu0
        %v2375 = vmul.f32 %v2372, %v2196
        %vm2376 = vcmask 516096
        %2377 = vst.msk [vmem:[%s340] sm:$0x1] %vm2376, %v2375
        %s2378 = sand.u32 %s201, 1
        %s2379 = scalar_lea.sflag [#allocation3], %s2378
        %s2380 = sand.u32 %s201, 1
        %s2381 = scalar_lea.vmem [#allocation2], %s2380
        %s2382 = sand.u32 %s227, 1
        %s2383 = scalar_lea.sflag [#allocation5], %s2382
        %s2384 = sand.u32 %s227, 1
        %s2385 = smul.addr %s2384, 4
        %s2386 = scalar_lea.vmem [#allocation4], %s2385
        // Predicated region
        $region49: #{_attention_forward_impl.1} parent=47 // pred_check
          %p2387 = pneg %p211
        $region50: #{_attention_forward_impl.1} parent=47 // pred_check_branch
          %2389 = sbr.rel (%p2387) target = $region52
        $region51: #{_attention_forward_impl.1} parent=47 // pred_region
          %s2391 = ssub.s32 16, 16
          %2392 = vsyncadd %s2379, %s2391
          %s2393 = smul.addr %s26, 16
          %s2394 = scalar_lea.hbm %s7, %s2393
          %s2396 = sshll.u32 %s2381, 4
          %s2397 = int_to_ptr.vmem [resolvable:$true] %s2396
          %2399 = dma.vmem_to_hbm [thread:$0]  %s2397, 16, %s2394, %s2379
        $region52: #{_attention_forward_impl.1} parent=47 // pred_fallthru
          _
        // Predicated region
        $region53: #{_attention_forward_impl.1} parent=47 // pred_check
          %p2400 = pneg %p237
        $region54: #{_attention_forward_impl.1} parent=47 // pred_check_branch
          %2402 = sbr.rel (%p2400) target = $region56
        $region55: #{_attention_forward_impl.1} parent=47 // pred_region
          %s2404 = ssub.s32 64, 64
          %2405 = vsyncadd %s2383, %s2404
          %s2406 = smul.addr %s26, 4
          %s2407 = smul.addr %s2406, 16
          %s2408 = scalar_lea.hbm %s8, %s2407
          %s2410 = sshll.u32 %s2386, 4
          %s2411 = int_to_ptr.vmem [resolvable:$true] %s2410
          %2413 = dma.vmem_to_hbm [thread:$0]  %s2411, 64, %s2408, %s2383
        $region56: #{_attention_forward_impl.1} parent=47 // pred_fallthru
          _
      $region48: #{_attention_forward_impl.1} parent=5 // pred_fallthru
        _
      %p2414 = scmp.le.s32.totalorder 2, %s21
      // Predicated region
      $region57: #{_attention_forward_impl.1} parent=5 // pred_check
        %p2415 = pneg %p2414
      $region58: #{_attention_forward_impl.1} parent=5 // pred_check_branch
        %2417 = sbr.rel (%p2415) target = $region60
      $region59: #{_attention_forward_impl.1} parent=5 // pred_region
        %s2418 = ssub.s32 %s21, 2
        // Predicated region
        $region61: #{_attention_forward_impl.1} parent=59 // pred_check
          %p2419 = pneg %p217
        $region62: #{_attention_forward_impl.1} parent=59 // pred_check_branch
          %2421 = sbr.rel (%p2419) target = $region64
        $region63: #{_attention_forward_impl.1} parent=59 // pred_region
          %s2422 = sand.u32 %s202, 1
          %s2423 = scalar_lea.sflag [#allocation3], %s2422
          %s2424 = sand.u32 %s202, 1
          %s2425 = scalar_lea.vmem [#allocation2], %s2424
          %2426 = dma.done %s2423, 16
        $region64: #{_attention_forward_impl.1} parent=59 // pred_fallthru
          _
        // Predicated region
        $region65: #{_attention_forward_impl.1} parent=59 // pred_check
          %p2427 = pneg %p243
        $region66: #{_attention_forward_impl.1} parent=59 // pred_check_branch
          %2429 = sbr.rel (%p2427) target = $region68
        $region67: #{_attention_forward_impl.1} parent=59 // pred_region
          %s2430 = sand.u32 %s228, 1
          %s2431 = scalar_lea.sflag [#allocation5], %s2430
          %s2432 = sand.u32 %s228, 1
          %s2433 = smul.addr %s2432, 4
          %s2434 = scalar_lea.vmem [#allocation4], %s2433
          %2435 = dma.done %s2431, 64
        $region68: #{_attention_forward_impl.1} parent=59 // pred_fallthru
          _
      $region60: #{_attention_forward_impl.1} parent=5 // pred_fallthru
        _
    $region6: #{_attention_forward_impl.1} parent=1 // loop_footer
      %s25 = sadd.s32 1, %s21
    $region7: #{_attention_forward_impl.1} parent=1 // loop_footer_branch
      %20 = sbr.rel target = $region3
    $region8: #{_attention_forward_impl.1} parent=1 // loop_exit
      _
    %2436 = vsyncpa [#allocation3], 1
    %s2437 = scalar_lea.sflag [#allocation3], 1
    %2438 = vsyncpa %s2437, 1
    %2439 = vsyncpa [#allocation5], 1
    %s2440 = scalar_lea.sflag [#allocation5], 1
    %2441 = vsyncpa %s2440, 1

</llo_original>
